<compile_context>
chip_gen: v5e
topology: v5e:2x2
jax: 0.10.0
libtpu: 0.0.40
codegen_flags: <defaults>
</compile_context>

<pallas_src>
import jax
import jax.numpy as jnp
from jax.experimental import pallas as pl
from jax.experimental.pallas import tpu as pltpu


# --------------------------------------------------------------------------
# Fused LSTM-layer kernel (optionally with the h2o head fused in).
# All operands are whole-array VMEM blocks (no grid).
# --------------------------------------------------------------------------
def _make_lstm_kernel(with_head: bool):
    def kernel(*refs):
        if with_head:
            (x_ref, h0_ref, c0_ref, wih_ref, whh_ref, b_ref,
             wo_ref, bo_ref, out_ref, hT_ref, cT_ref, hseq_ref) = refs
        else:
            (x_ref, h0_ref, c0_ref, wih_ref, whh_ref, b_ref,
             out_ref, hT_ref, cT_ref) = refs

        B, T, I = x_ref.shape
        H = h0_ref.shape[-1]

        # ---- Hoisted input projection: single MXU matmul over all B*T rows and
        #      all 4 gates at once; fused (b_ih + b_hh) bias added here. ----
        x2d = x_ref[...].reshape(B * T, I).astype(jnp.float32)          # (B*T, I)
        xp = jnp.dot(x2d, wih_ref[...],
                     preferred_element_type=jnp.float32) + b_ref[...]   # (B*T, 4H)
        xp = xp.reshape(B, T, 4 * H)                                    # batch-first

        whh = whh_ref[...]          # (H, 4H), loaded once, reused every step

        h = h0_ref[...].astype(jnp.float32)
        c = c0_ref[...].astype(jnp.float32)

        # ---- Recurrence: fully unrolled time loop (small T); ONE fused-gate
        #      MXU matmul per step, then static lane slices per gate. ----
        for t in range(T):
            pre = xp[:, t, :] + jnp.dot(h, whh,
                                        preferred_element_type=jnp.float32)  # (B, 4H)
            gi = jax.nn.sigmoid(pre[:, 0 * H:1 * H])
            gf = jax.nn.sigmoid(pre[:, 1 * H:2 * H])
            gg = jnp.tanh(pre[:, 2 * H:3 * H])
            go = jax.nn.sigmoid(pre[:, 3 * H:4 * H])

            c = gf * c + gi * gg
            h = go * jnp.tanh(c)

            if with_head:
                hseq_ref[:, pl.ds(t, 1), :] = h.reshape(B, 1, H)
            else:
                out_ref[:, pl.ds(t, 1), :] = h.reshape(B, 1, H).astype(out_ref.dtype)

        if with_head:
            # Deferred h2o head: one (B*T, H)@(H, O) matmul + one bulk store,
            # instead of T per-step matmuls and T narrow masked stores.
            O = out_ref.shape[-1]
            y = jnp.dot(hseq_ref[...].reshape(B * T, H), wo_ref[...],
                        preferred_element_type=jnp.float32) + bo_ref[...]
            out_ref[...] = y.reshape(B, T, O).astype(out_ref.dtype)

        hT_ref[...] = h.astype(hT_ref.dtype)
        cT_ref[...] = c.astype(cT_ref.dtype)

    return kernel


def _lstm_layer_call(x, h0, c0, lp, head=None):
    """One LSTM layer (optionally with fused h2o head).

    x: (B, T, I) batch-first.  Returns (out, h_T, c_T) where out is (B, T, O) if
    head is given, else the hidden sequence (B, T, H)."""
    B, T, _ = x.shape
    H = h0.shape[-1]
    with_head = head is not None

    args = [x, h0, c0, lp["wih"], lp["whh"], lp["b"]]
    scratch = []
    if with_head:
        wo_t, bo = head
        args += [wo_t, bo]
        out0 = jax.ShapeDtypeStruct((B, T, wo_t.shape[-1]), x.dtype)
        scratch = [pltpu.VMEM((B, T, H), jnp.float32)]   # per-step hidden-state stash
    else:
        out0 = jax.ShapeDtypeStruct((B, T, H), x.dtype)

    out_shapes = (out0,
                  jax.ShapeDtypeStruct((B, H), x.dtype),
                  jax.ShapeDtypeStruct((B, H), x.dtype))
    vmem = pltpu.MemorySpace.VMEM
    return pl.pallas_call(
        _make_lstm_kernel(with_head),
        out_shape=out_shapes,
        in_specs=[pl.BlockSpec(memory_space=vmem)] * len(args),
        out_specs=(pl.BlockSpec(memory_space=vmem),) * 3,
        scratch_shapes=scratch,
    )(*args)


# --------------------------------------------------------------------------
# Net forward pass (mirrors the PyTorch module: out, (h_n, c_n) = Net(x, hidden))
# --------------------------------------------------------------------------
def net_forward(params, x, hidden_state):
    """params: output of prepare_params().  x: (B, T, input_size) batch-first.
    hidden_state = (h0, c0), each (num_layers, B, H)."""
    h0, c0 = hidden_state
    layers = params["lstm"]
    num_layers = len(layers)
    head = (params["h2o"]["w_t"], params["h2o"]["b"])

    # TODO(synk): for num_layers > 1 the per-layer pallas_calls could be fused into one
    # kernel keeping intermediate h_seq in VMEM (default/test config is num_layers=1).
    h_fin, c_fin = [], []
    layer_in = x
    for l, lp in enumerate(layers):
        is_last = (l == num_layers - 1)
        out, hT, cT = _lstm_layer_call(layer_in, h0[l], c0[l], lp,
                                       head=head if is_last else None)
        h_fin.append(hT)
        c_fin.append(cT)
        layer_in = out
    return layer_in, (jnp.stack(h_fin, 0), jnp.stack(c_fin, 0))


# --------------------------------------------------------------------------
# One-time parameter preparation: transpose + gate-concatenated layout, bias fusion.
# --------------------------------------------------------------------------
def prepare_params(raw):
    prepared = {"lstm": [], "h2o": {}}
    for p in raw["lstm"]:
        prepared["lstm"].append({
            "wih": jnp.transpose(p["w_ih"]),                 # (I, 4H), gate order i,f,g,o
            "whh": jnp.transpose(p["w_hh"]),                 # (H, 4H)
            "b": (p["b_ih"] + p["b_hh"]).reshape(1, -1),     # (1, 4H)
        })
    prepared["h2o"]["w_t"] = jnp.transpose(raw["h2o"]["w"])  # (H, O)
    prepared["h2o"]["b"] = raw["h2o"]["b"].reshape(1, -1)    # (1, O)
    return prepared


# --------------------------------------------------------------------------
# PyTorch-layout parameter init (uniform(-1/sqrt(H), 1/sqrt(H)))
# --------------------------------------------------------------------------
def init_params(key, input_size, hidden_size, output_size, num_layers=1):
    k = 1.0 / jnp.sqrt(hidden_size)
    params = {"lstm": [], "h2o": {}}
    for l in range(num_layers):
        in_sz = input_size if l == 0 else hidden_size
        key, k1, k2, k3, k4 = jax.random.split(key, 5)
        params["lstm"].append({
            "w_ih": jax.random.uniform(k1, (4 * hidden_size, in_sz), jnp.float32, -k, k),
            "w_hh": jax.random.uniform(k2, (4 * hidden_size, hidden_size), jnp.float32, -k, k),
            "b_ih": jax.random.uniform(k3, (4 * hidden_size,), jnp.float32, -k, k),
            "b_hh": jax.random.uniform(k4, (4 * hidden_size,), jnp.float32, -k, k),
        })
    key, k1, k2 = jax.random.split(key, 3)
    params["h2o"]["w"] = jax.random.uniform(k1, (output_size, hidden_size), jnp.float32, -k, k)
    params["h2o"]["b"] = jax.random.uniform(k2, (output_size,), jnp.float32, -k, k)
    return params


# --------------------------------------------------------------------------
# Pure-JAX reference (uses raw PyTorch-layout params) for a silent check
# --------------------------------------------------------------------------
def _ref_forward(params, x, hidden_state):
    h0, c0 = hidden_state
    B, T, _ = x.shape
    layer_in = x
    h_fs, c_fs = [], []
    for l, p in enumerate(params["lstm"]):
        H = p["w_hh"].shape[1]
        h, c = h0[l], c0[l]
        outs = []
        for t in range(T):
            g = (layer_in[:, t, :] @ p["w_ih"].T + p["b_ih"]
                 + h @ p["w_hh"].T + p["b_hh"])
            i_g = jax.nn.sigmoid(g[:, 0 * H:1 * H])
            f_g = jax.nn.sigmoid(g[:, 1 * H:2 * H])
            g_g = jnp.tanh(g[:, 2 * H:3 * H])
            o_g = jax.nn.sigmoid(g[:, 3 * H:4 * H])
            c = f_g * c + i_g * g_g
            h = o_g * jnp.tanh(c)
            outs.append(h)
        layer_in = jnp.stack(outs, axis=1)
        h_fs.append(h)
        c_fs.append(c)
    out = layer_in @ params["h2o"]["w"].T + params["h2o"]["b"]
    return out, (jnp.stack(h_fs, 0), jnp.stack(c_fs, 0))


if __name__ == "__main__":
    # Small shapes consistent with the module: batch=2, seq=8, input=16, hidden=32, output=8
    batch, seq, input_size, hidden_size, output_size, num_layers = 2, 8, 16, 32, 8, 1

    key = jax.random.PRNGKey(0)
    kx, kh, kc, kp = jax.random.split(key, 4)
    raw_params = init_params(kp, input_size, hidden_size, output_size, num_layers)
    params = prepare_params(raw_params)        # one-time weight re-layout (static weights)

    x = jax.random.normal(kx, (batch, seq, input_size), jnp.float32)
    h0 = 0.1 * jax.random.normal(kh, (num_layers, batch, hidden_size), jnp.float32)
    c0 = 0.1 * jax.random.normal(kc, (num_layers, batch, hidden_size), jnp.float32)

    fwd = jax.jit(net_forward)
    out, (h_n, c_n) = fwd(params, x, (h0, c0))
    jax.block_until_ready((out, h_n, c_n))

    # silent correctness check against a pure-JAX reference
    ref_out, (ref_h, ref_c) = _ref_forward(raw_params, x, (h0, c0))
    assert jnp.allclose(out, ref_out, atol=1e-4, rtol=1e-4)
    assert jnp.allclose(h_n, ref_h, atol=1e-4, rtol=1e-4)
    assert jnp.allclose(c_n, ref_c, atol=1e-4, rtol=1e-4)

    print("KERNEL_OK")
</pallas_src>

<mosaic_0001>
module attributes {stable_mosaic.version = 11 : i64} {
  func.func @kernel(%arg0: memref<2x8x16xf32, #tpu.memory_space<vmem>>, %arg1: memref<2x32xf32, #tpu.memory_space<vmem>>, %arg2: memref<2x32xf32, #tpu.memory_space<vmem>>, %arg3: memref<16x128xf32, #tpu.memory_space<vmem>>, %arg4: memref<32x128xf32, #tpu.memory_space<vmem>>, %arg5: memref<1x128xf32, #tpu.memory_space<vmem>>, %arg6: memref<32x8xf32, #tpu.memory_space<vmem>>, %arg7: memref<1x8xf32, #tpu.memory_space<vmem>>, %arg8: memref<2x8x8xf32, #tpu.memory_space<vmem>>, %arg9: memref<2x32xf32, #tpu.memory_space<vmem>>, %arg10: memref<2x32xf32, #tpu.memory_space<vmem>>, %arg11: memref<2x8x32xf32, #tpu.memory_space<vmem>>) attributes {dimension_semantics = [], scalar_prefetch = 0 : i64, scratch_operands = 1 : i64, tpu.core_type = #tpu.core_type<tc>} {
    %c0 = arith.constant 0 : index
    %c0_0 = arith.constant 0 : index
    %c0_1 = arith.constant 0 : index
    %0 = vector.load %arg0[%c0, %c0_0, %c0_1] : memref<2x8x16xf32, #tpu.memory_space<vmem>>, vector<2x8x16xf32>
    %1 = vector.shape_cast %0 : vector<2x8x16xf32> to vector<16x16xf32>
    %c0_2 = arith.constant 0 : index
    %c0_3 = arith.constant 0 : index
    %2 = vector.load %arg3[%c0_2, %c0_3] : memref<16x128xf32, #tpu.memory_space<vmem>>, vector<16x128xf32>
    %cst = arith.constant dense<0.000000e+00> : vector<16x128xf32>
    %3 = tpu.matmul %1, %2, %cst {dimension_numbers = #tpu.dot_dimension_numbers<[1], [0], [0], [1], [0, 0, 1, 1], [], []>} : vector<16x16xf32>, vector<16x128xf32>, vector<16x128xf32> -> vector<16x128xf32>
    %c0_4 = arith.constant 0 : index
    %c0_5 = arith.constant 0 : index
    %4 = vector.load %arg5[%c0_4, %c0_5] : memref<1x128xf32, #tpu.memory_space<vmem>>, vector<1x128xf32>
    %5 = vector.broadcast %4 : vector<1x128xf32> to vector<16x128xf32>
    %6 = arith.addf %3, %5 : vector<16x128xf32>
    %7 = vector.shape_cast %6 : vector<16x128xf32> to vector<2x8x128xf32>
    %c0_6 = arith.constant 0 : index
    %c0_7 = arith.constant 0 : index
    %8 = vector.load %arg4[%c0_6, %c0_7] : memref<32x128xf32, #tpu.memory_space<vmem>>, vector<32x128xf32>
    %c0_8 = arith.constant 0 : index
    %c0_9 = arith.constant 0 : index
    %9 = vector.load %arg1[%c0_8, %c0_9] : memref<2x32xf32, #tpu.memory_space<vmem>>, vector<2x32xf32>
    %c0_10 = arith.constant 0 : index
    %c0_11 = arith.constant 0 : index
    %10 = vector.load %arg2[%c0_10, %c0_11] : memref<2x32xf32, #tpu.memory_space<vmem>>, vector<2x32xf32>
    %11 = vector.extract_strided_slice %7 {offsets = [0, 0, 0], sizes = [2, 1, 128], strides = [1, 1, 1]} : vector<2x8x128xf32> to vector<2x1x128xf32>
    %12 = vector.shape_cast %11 : vector<2x1x128xf32> to vector<2x128xf32>
    %cst_12 = arith.constant dense<0.000000e+00> : vector<2x128xf32>
    %13 = tpu.matmul %9, %8, %cst_12 {dimension_numbers = #tpu.dot_dimension_numbers<[1], [0], [0], [1], [0, 0, 1, 1], [], []>} : vector<2x32xf32>, vector<32x128xf32>, vector<2x128xf32> -> vector<2x128xf32>
    %14 = arith.addf %12, %13 : vector<2x128xf32>
    %15 = vector.extract_strided_slice %14 {offsets = [0, 0], sizes = [2, 32], strides = [1, 1]} : vector<2x128xf32> to vector<2x32xf32>
    %16 = arith.negf %15 : vector<2x32xf32>
    %17 = math.exp %16 : vector<2x32xf32>
    %cst_13 = arith.constant 1.000000e+00 : f32
    %18 = vector.broadcast %cst_13 : f32 to vector<2x32xf32>
    %19 = arith.addf %18, %17 : vector<2x32xf32>
    %20 = arith.divf %18, %19 : vector<2x32xf32>
    %21 = vector.extract_strided_slice %14 {offsets = [0, 32], sizes = [2, 32], strides = [1, 1]} : vector<2x128xf32> to vector<2x32xf32>
    %22 = arith.negf %21 : vector<2x32xf32>
    %23 = math.exp %22 : vector<2x32xf32>
    %cst_14 = arith.constant 1.000000e+00 : f32
    %24 = vector.broadcast %cst_14 : f32 to vector<2x32xf32>
    %25 = arith.addf %24, %23 : vector<2x32xf32>
    %26 = arith.divf %24, %25 : vector<2x32xf32>
    %27 = vector.extract_strided_slice %14 {offsets = [0, 64], sizes = [2, 32], strides = [1, 1]} : vector<2x128xf32> to vector<2x32xf32>
    %28 = math.tanh %27 : vector<2x32xf32>
    %29 = vector.extract_strided_slice %14 {offsets = [0, 96], sizes = [2, 32], strides = [1, 1]} : vector<2x128xf32> to vector<2x32xf32>
    %30 = arith.negf %29 : vector<2x32xf32>
    %31 = math.exp %30 : vector<2x32xf32>
    %cst_15 = arith.constant 1.000000e+00 : f32
    %32 = vector.broadcast %cst_15 : f32 to vector<2x32xf32>
    %33 = arith.addf %32, %31 : vector<2x32xf32>
    %34 = arith.divf %32, %33 : vector<2x32xf32>
    %35 = arith.mulf %26, %10 : vector<2x32xf32>
    %36 = arith.mulf %20, %28 : vector<2x32xf32>
    %37 = arith.addf %35, %36 : vector<2x32xf32>
    %38 = math.tanh %37 : vector<2x32xf32>
    %39 = arith.mulf %34, %38 : vector<2x32xf32>
    %40 = vector.shape_cast %39 : vector<2x32xf32> to vector<2x1x32xf32>
    %c0_16 = arith.constant 0 : index
    %c0_17 = arith.constant 0 : index
    %c0_18 = arith.constant 0 : index
    %41 = vector.load %arg11[%c0_16, %c0_17, %c0_18] : memref<2x8x32xf32, #tpu.memory_space<vmem>>, vector<2x1x32xf32>
    tpu.vector_store %arg11[%c0_16, %c0_17, %c0_18], %40 {strides = array<i32>} : memref<2x8x32xf32, #tpu.memory_space<vmem>>, vector<2x1x32xf32>,
    %42 = vector.extract_strided_slice %7 {offsets = [0, 1, 0], sizes = [2, 1, 128], strides = [1, 1, 1]} : vector<2x8x128xf32> to vector<2x1x128xf32>
    %43 = vector.shape_cast %42 : vector<2x1x128xf32> to vector<2x128xf32>
    %cst_19 = arith.constant dense<0.000000e+00> : vector<2x128xf32>
    %44 = tpu.matmul %39, %8, %cst_19 {dimension_numbers = #tpu.dot_dimension_numbers<[1], [0], [0], [1], [0, 0, 1, 1], [], []>} : vector<2x32xf32>, vector<32x128xf32>, vector<2x128xf32> -> vector<2x128xf32>
    %45 = arith.addf %43, %44 : vector<2x128xf32>
    %46 = vector.extract_strided_slice %45 {offsets = [0, 0], sizes = [2, 32], strides = [1, 1]} : vector<2x128xf32> to vector<2x32xf32>
    %47 = arith.negf %46 : vector<2x32xf32>
    %48 = math.exp %47 : vector<2x32xf32>
    %cst_20 = arith.constant 1.000000e+00 : f32
    %49 = vector.broadcast %cst_20 : f32 to vector<2x32xf32>
    %50 = arith.addf %49, %48 : vector<2x32xf32>
    %51 = arith.divf %49, %50 : vector<2x32xf32>
    %52 = vector.extract_strided_slice %45 {offsets = [0, 32], sizes = [2, 32], strides = [1, 1]} : vector<2x128xf32> to vector<2x32xf32>
    %53 = arith.negf %52 : vector<2x32xf32>
    %54 = math.exp %53 : vector<2x32xf32>
    %cst_21 = arith.constant 1.000000e+00 : f32
    %55 = vector.broadcast %cst_21 : f32 to vector<2x32xf32>
    %56 = arith.addf %55, %54 : vector<2x32xf32>
    %57 = arith.divf %55, %56 : vector<2x32xf32>
    %58 = vector.extract_strided_slice %45 {offsets = [0, 64], sizes = [2, 32], strides = [1, 1]} : vector<2x128xf32> to vector<2x32xf32>
    %59 = math.tanh %58 : vector<2x32xf32>
    %60 = vector.extract_strided_slice %45 {offsets = [0, 96], sizes = [2, 32], strides = [1, 1]} : vector<2x128xf32> to vector<2x32xf32>
    %61 = arith.negf %60 : vector<2x32xf32>
    %62 = math.exp %61 : vector<2x32xf32>
    %cst_22 = arith.constant 1.000000e+00 : f32
    %63 = vector.broadcast %cst_22 : f32 to vector<2x32xf32>
    %64 = arith.addf %63, %62 : vector<2x32xf32>
    %65 = arith.divf %63, %64 : vector<2x32xf32>
    %66 = arith.mulf %57, %37 : vector<2x32xf32>
    %67 = arith.mulf %51, %59 : vector<2x32xf32>
    %68 = arith.addf %66, %67 : vector<2x32xf32>
    %69 = math.tanh %68 : vector<2x32xf32>
    %70 = arith.mulf %65, %69 : vector<2x32xf32>
    %71 = vector.shape_cast %70 : vector<2x32xf32> to vector<2x1x32xf32>
    %c0_23 = arith.constant 0 : index
    %c1 = arith.constant 1 : index
    %c0_24 = arith.constant 0 : index
    %72 = vector.load %arg11[%c0_23, %c1, %c0_24] : memref<2x8x32xf32, #tpu.memory_space<vmem>>, vector<2x1x32xf32>
    tpu.vector_store %arg11[%c0_23, %c1, %c0_24], %71 {strides = array<i32>} : memref<2x8x32xf32, #tpu.memory_space<vmem>>, vector<2x1x32xf32>,
    %73 = vector.extract_strided_slice %7 {offsets = [0, 2, 0], sizes = [2, 1, 128], strides = [1, 1, 1]} : vector<2x8x128xf32> to vector<2x1x128xf32>
    %74 = vector.shape_cast %73 : vector<2x1x128xf32> to vector<2x128xf32>
    %cst_25 = arith.constant dense<0.000000e+00> : vector<2x128xf32>
    %75 = tpu.matmul %70, %8, %cst_25 {dimension_numbers = #tpu.dot_dimension_numbers<[1], [0], [0], [1], [0, 0, 1, 1], [], []>} : vector<2x32xf32>, vector<32x128xf32>, vector<2x128xf32> -> vector<2x128xf32>
    %76 = arith.addf %74, %75 : vector<2x128xf32>
    %77 = vector.extract_strided_slice %76 {offsets = [0, 0], sizes = [2, 32], strides = [1, 1]} : vector<2x128xf32> to vector<2x32xf32>
    %78 = arith.negf %77 : vector<2x32xf32>
    %79 = math.exp %78 : vector<2x32xf32>
    %cst_26 = arith.constant 1.000000e+00 : f32
    %80 = vector.broadcast %cst_26 : f32 to vector<2x32xf32>
    %81 = arith.addf %80, %79 : vector<2x32xf32>
    %82 = arith.divf %80, %81 : vector<2x32xf32>
    %83 = vector.extract_strided_slice %76 {offsets = [0, 32], sizes = [2, 32], strides = [1, 1]} : vector<2x128xf32> to vector<2x32xf32>
    %84 = arith.negf %83 : vector<2x32xf32>
    %85 = math.exp %84 : vector<2x32xf32>
    %cst_27 = arith.constant 1.000000e+00 : f32
    %86 = vector.broadcast %cst_27 : f32 to vector<2x32xf32>
    %87 = arith.addf %86, %85 : vector<2x32xf32>
    %88 = arith.divf %86, %87 : vector<2x32xf32>
    %89 = vector.extract_strided_slice %76 {offsets = [0, 64], sizes = [2, 32], strides = [1, 1]} : vector<2x128xf32> to vector<2x32xf32>
    %90 = math.tanh %89 : vector<2x32xf32>
    %91 = vector.extract_strided_slice %76 {offsets = [0, 96], sizes = [2, 32], strides = [1, 1]} : vector<2x128xf32> to vector<2x32xf32>
    %92 = arith.negf %91 : vector<2x32xf32>
    %93 = math.exp %92 : vector<2x32xf32>
    %cst_28 = arith.constant 1.000000e+00 : f32
    %94 = vector.broadcast %cst_28 : f32 to vector<2x32xf32>
    %95 = arith.addf %94, %93 : vector<2x32xf32>
    %96 = arith.divf %94, %95 : vector<2x32xf32>
    %97 = arith.mulf %88, %68 : vector<2x32xf32>
    %98 = arith.mulf %82, %90 : vector<2x32xf32>
    %99 = arith.addf %97, %98 : vector<2x32xf32>
    %100 = math.tanh %99 : vector<2x32xf32>
    %101 = arith.mulf %96, %100 : vector<2x32xf32>
    %102 = vector.shape_cast %101 : vector<2x32xf32> to vector<2x1x32xf32>
    %c0_29 = arith.constant 0 : index
    %c2 = arith.constant 2 : index
    %c0_30 = arith.constant 0 : index
    %103 = vector.load %arg11[%c0_29, %c2, %c0_30] : memref<2x8x32xf32, #tpu.memory_space<vmem>>, vector<2x1x32xf32>
    tpu.vector_store %arg11[%c0_29, %c2, %c0_30], %102 {strides = array<i32>} : memref<2x8x32xf32, #tpu.memory_space<vmem>>, vector<2x1x32xf32>,
    %104 = vector.extract_strided_slice %7 {offsets = [0, 3, 0], sizes = [2, 1, 128], strides = [1, 1, 1]} : vector<2x8x128xf32> to vector<2x1x128xf32>
    %105 = vector.shape_cast %104 : vector<2x1x128xf32> to vector<2x128xf32>
    %cst_31 = arith.constant dense<0.000000e+00> : vector<2x128xf32>
    %106 = tpu.matmul %101, %8, %cst_31 {dimension_numbers = #tpu.dot_dimension_numbers<[1], [0], [0], [1], [0, 0, 1, 1], [], []>} : vector<2x32xf32>, vector<32x128xf32>, vector<2x128xf32> -> vector<2x128xf32>
    %107 = arith.addf %105, %106 : vector<2x128xf32>
    %108 = vector.extract_strided_slice %107 {offsets = [0, 0], sizes = [2, 32], strides = [1, 1]} : vector<2x128xf32> to vector<2x32xf32>
    %109 = arith.negf %108 : vector<2x32xf32>
    %110 = math.exp %109 : vector<2x32xf32>
    %cst_32 = arith.constant 1.000000e+00 : f32
    %111 = vector.broadcast %cst_32 : f32 to vector<2x32xf32>
    %112 = arith.addf %111, %110 : vector<2x32xf32>
    %113 = arith.divf %111, %112 : vector<2x32xf32>
    %114 = vector.extract_strided_slice %107 {offsets = [0, 32], sizes = [2, 32], strides = [1, 1]} : vector<2x128xf32> to vector<2x32xf32>
    %115 = arith.negf %114 : vector<2x32xf32>
    %116 = math.exp %115 : vector<2x32xf32>
    %cst_33 = arith.constant 1.000000e+00 : f32
    %117 = vector.broadcast %cst_33 : f32 to vector<2x32xf32>
    %118 = arith.addf %117, %116 : vector<2x32xf32>
    %119 = arith.divf %117, %118 : vector<2x32xf32>
    %120 = vector.extract_strided_slice %107 {offsets = [0, 64], sizes = [2, 32], strides = [1, 1]} : vector<2x128xf32> to vector<2x32xf32>
    %121 = math.tanh %120 : vector<2x32xf32>
    %122 = vector.extract_strided_slice %107 {offsets = [0, 96], sizes = [2, 32], strides = [1, 1]} : vector<2x128xf32> to vector<2x32xf32>
    %123 = arith.negf %122 : vector<2x32xf32>
    %124 = math.exp %123 : vector<2x32xf32>
    %cst_34 = arith.constant 1.000000e+00 : f32
    %125 = vector.broadcast %cst_34 : f32 to vector<2x32xf32>
    %126 = arith.addf %125, %124 : vector<2x32xf32>
    %127 = arith.divf %125, %126 : vector<2x32xf32>
    %128 = arith.mulf %119, %99 : vector<2x32xf32>
    %129 = arith.mulf %113, %121 : vector<2x32xf32>
    %130 = arith.addf %128, %129 : vector<2x32xf32>
    %131 = math.tanh %130 : vector<2x32xf32>
    %132 = arith.mulf %127, %131 : vector<2x32xf32>
    %133 = vector.shape_cast %132 : vector<2x32xf32> to vector<2x1x32xf32>
    %c0_35 = arith.constant 0 : index
    %c3 = arith.constant 3 : index
    %c0_36 = arith.constant 0 : index
    %134 = vector.load %arg11[%c0_35, %c3, %c0_36] : memref<2x8x32xf32, #tpu.memory_space<vmem>>, vector<2x1x32xf32>
    tpu.vector_store %arg11[%c0_35, %c3, %c0_36], %133 {strides = array<i32>} : memref<2x8x32xf32, #tpu.memory_space<vmem>>, vector<2x1x32xf32>,
    %135 = vector.extract_strided_slice %7 {offsets = [0, 4, 0], sizes = [2, 1, 128], strides = [1, 1, 1]} : vector<2x8x128xf32> to vector<2x1x128xf32>
    %136 = vector.shape_cast %135 : vector<2x1x128xf32> to vector<2x128xf32>
    %cst_37 = arith.constant dense<0.000000e+00> : vector<2x128xf32>
    %137 = tpu.matmul %132, %8, %cst_37 {dimension_numbers = #tpu.dot_dimension_numbers<[1], [0], [0], [1], [0, 0, 1, 1], [], []>} : vector<2x32xf32>, vector<32x128xf32>, vector<2x128xf32> -> vector<2x128xf32>
    %138 = arith.addf %136, %137 : vector<2x128xf32>
    %139 = vector.extract_strided_slice %138 {offsets = [0, 0], sizes = [2, 32], strides = [1, 1]} : vector<2x128xf32> to vector<2x32xf32>
    %140 = arith.negf %139 : vector<2x32xf32>
    %141 = math.exp %140 : vector<2x32xf32>
    %cst_38 = arith.constant 1.000000e+00 : f32
    %142 = vector.broadcast %cst_38 : f32 to vector<2x32xf32>
    %143 = arith.addf %142, %141 : vector<2x32xf32>
    %144 = arith.divf %142, %143 : vector<2x32xf32>
    %145 = vector.extract_strided_slice %138 {offsets = [0, 32], sizes = [2, 32], strides = [1, 1]} : vector<2x128xf32> to vector<2x32xf32>
    %146 = arith.negf %145 : vector<2x32xf32>
    %147 = math.exp %146 : vector<2x32xf32>
    %cst_39 = arith.constant 1.000000e+00 : f32
    %148 = vector.broadcast %cst_39 : f32 to vector<2x32xf32>
    %149 = arith.addf %148, %147 : vector<2x32xf32>
    %150 = arith.divf %148, %149 : vector<2x32xf32>
    %151 = vector.extract_strided_slice %138 {offsets = [0, 64], sizes = [2, 32], strides = [1, 1]} : vector<2x128xf32> to vector<2x32xf32>
    %152 = math.tanh %151 : vector<2x32xf32>
    %153 = vector.extract_strided_slice %138 {offsets = [0, 96], sizes = [2, 32], strides = [1, 1]} : vector<2x128xf32> to vector<2x32xf32>
    %154 = arith.negf %153 : vector<2x32xf32>
    %155 = math.exp %154 : vector<2x32xf32>
    %cst_40 = arith.constant 1.000000e+00 : f32
    %156 = vector.broadcast %cst_40 : f32 to vector<2x32xf32>
    %157 = arith.addf %156, %155 : vector<2x32xf32>
    %158 = arith.divf %156, %157 : vector<2x32xf32>
    %159 = arith.mulf %150, %130 : vector<2x32xf32>
    %160 = arith.mulf %144, %152 : vector<2x32xf32>
    %161 = arith.addf %159, %160 : vector<2x32xf32>
    %162 = math.tanh %161 : vector<2x32xf32>
    %163 = arith.mulf %158, %162 : vector<2x32xf32>
    %164 = vector.shape_cast %163 : vector<2x32xf32> to vector<2x1x32xf32>
    %c0_41 = arith.constant 0 : index
    %c4 = arith.constant 4 : index
    %c0_42 = arith.constant 0 : index
    %165 = vector.load %arg11[%c0_41, %c4, %c0_42] : memref<2x8x32xf32, #tpu.memory_space<vmem>>, vector<2x1x32xf32>
    tpu.vector_store %arg11[%c0_41, %c4, %c0_42], %164 {strides = array<i32>} : memref<2x8x32xf32, #tpu.memory_space<vmem>>, vector<2x1x32xf32>,
    %166 = vector.extract_strided_slice %7 {offsets = [0, 5, 0], sizes = [2, 1, 128], strides = [1, 1, 1]} : vector<2x8x128xf32> to vector<2x1x128xf32>
    %167 = vector.shape_cast %166 : vector<2x1x128xf32> to vector<2x128xf32>
    %cst_43 = arith.constant dense<0.000000e+00> : vector<2x128xf32>
    %168 = tpu.matmul %163, %8, %cst_43 {dimension_numbers = #tpu.dot_dimension_numbers<[1], [0], [0], [1], [0, 0, 1, 1], [], []>} : vector<2x32xf32>, vector<32x128xf32>, vector<2x128xf32> -> vector<2x128xf32>
    %169 = arith.addf %167, %168 : vector<2x128xf32>
    %170 = vector.extract_strided_slice %169 {offsets = [0, 0], sizes = [2, 32], strides = [1, 1]} : vector<2x128xf32> to vector<2x32xf32>
    %171 = arith.negf %170 : vector<2x32xf32>
    %172 = math.exp %171 : vector<2x32xf32>
    %cst_44 = arith.constant 1.000000e+00 : f32
    %173 = vector.broadcast %cst_44 : f32 to vector<2x32xf32>
    %174 = arith.addf %173, %172 : vector<2x32xf32>
    %175 = arith.divf %173, %174 : vector<2x32xf32>
    %176 = vector.extract_strided_slice %169 {offsets = [0, 32], sizes = [2, 32], strides = [1, 1]} : vector<2x128xf32> to vector<2x32xf32>
    %177 = arith.negf %176 : vector<2x32xf32>
    %178 = math.exp %177 : vector<2x32xf32>
    %cst_45 = arith.constant 1.000000e+00 : f32
    %179 = vector.broadcast %cst_45 : f32 to vector<2x32xf32>
    %180 = arith.addf %179, %178 : vector<2x32xf32>
    %181 = arith.divf %179, %180 : vector<2x32xf32>
    %182 = vector.extract_strided_slice %169 {offsets = [0, 64], sizes = [2, 32], strides = [1, 1]} : vector<2x128xf32> to vector<2x32xf32>
    %183 = math.tanh %182 : vector<2x32xf32>
    %184 = vector.extract_strided_slice %169 {offsets = [0, 96], sizes = [2, 32], strides = [1, 1]} : vector<2x128xf32> to vector<2x32xf32>
    %185 = arith.negf %184 : vector<2x32xf32>
    %186 = math.exp %185 : vector<2x32xf32>
    %cst_46 = arith.constant 1.000000e+00 : f32
    %187 = vector.broadcast %cst_46 : f32 to vector<2x32xf32>
    %188 = arith.addf %187, %186 : vector<2x32xf32>
    %189 = arith.divf %187, %188 : vector<2x32xf32>
    %190 = arith.mulf %181, %161 : vector<2x32xf32>
    %191 = arith.mulf %175, %183 : vector<2x32xf32>
    %192 = arith.addf %190, %191 : vector<2x32xf32>
    %193 = math.tanh %192 : vector<2x32xf32>
    %194 = arith.mulf %189, %193 : vector<2x32xf32>
    %195 = vector.shape_cast %194 : vector<2x32xf32> to vector<2x1x32xf32>
    %c0_47 = arith.constant 0 : index
    %c5 = arith.constant 5 : index
    %c0_48 = arith.constant 0 : index
    %196 = vector.load %arg11[%c0_47, %c5, %c0_48] : memref<2x8x32xf32, #tpu.memory_space<vmem>>, vector<2x1x32xf32>
    tpu.vector_store %arg11[%c0_47, %c5, %c0_48], %195 {strides = array<i32>} : memref<2x8x32xf32, #tpu.memory_space<vmem>>, vector<2x1x32xf32>,
    %197 = vector.extract_strided_slice %7 {offsets = [0, 6, 0], sizes = [2, 1, 128], strides = [1, 1, 1]} : vector<2x8x128xf32> to vector<2x1x128xf32>
    %198 = vector.shape_cast %197 : vector<2x1x128xf32> to vector<2x128xf32>
    %cst_49 = arith.constant dense<0.000000e+00> : vector<2x128xf32>
    %199 = tpu.matmul %194, %8, %cst_49 {dimension_numbers = #tpu.dot_dimension_numbers<[1], [0], [0], [1], [0, 0, 1, 1], [], []>} : vector<2x32xf32>, vector<32x128xf32>, vector<2x128xf32> -> vector<2x128xf32>
    %200 = arith.addf %198, %199 : vector<2x128xf32>
    %201 = vector.extract_strided_slice %200 {offsets = [0, 0], sizes = [2, 32], strides = [1, 1]} : vector<2x128xf32> to vector<2x32xf32>
    %202 = arith.negf %201 : vector<2x32xf32>
    %203 = math.exp %202 : vector<2x32xf32>
    %cst_50 = arith.constant 1.000000e+00 : f32
    %204 = vector.broadcast %cst_50 : f32 to vector<2x32xf32>
    %205 = arith.addf %204, %203 : vector<2x32xf32>
    %206 = arith.divf %204, %205 : vector<2x32xf32>
    %207 = vector.extract_strided_slice %200 {offsets = [0, 32], sizes = [2, 32], strides = [1, 1]} : vector<2x128xf32> to vector<2x32xf32>
    %208 = arith.negf %207 : vector<2x32xf32>
    %209 = math.exp %208 : vector<2x32xf32>
    %cst_51 = arith.constant 1.000000e+00 : f32
    %210 = vector.broadcast %cst_51 : f32 to vector<2x32xf32>
    %211 = arith.addf %210, %209 : vector<2x32xf32>
    %212 = arith.divf %210, %211 : vector<2x32xf32>
    %213 = vector.extract_strided_slice %200 {offsets = [0, 64], sizes = [2, 32], strides = [1, 1]} : vector<2x128xf32> to vector<2x32xf32>
    %214 = math.tanh %213 : vector<2x32xf32>
    %215 = vector.extract_strided_slice %200 {offsets = [0, 96], sizes = [2, 32], strides = [1, 1]} : vector<2x128xf32> to vector<2x32xf32>
    %216 = arith.negf %215 : vector<2x32xf32>
    %217 = math.exp %216 : vector<2x32xf32>
    %cst_52 = arith.constant 1.000000e+00 : f32
    %218 = vector.broadcast %cst_52 : f32 to vector<2x32xf32>
    %219 = arith.addf %218, %217 : vector<2x32xf32>
    %220 = arith.divf %218, %219 : vector<2x32xf32>
    %221 = arith.mulf %212, %192 : vector<2x32xf32>
    %222 = arith.mulf %206, %214 : vector<2x32xf32>
    %223 = arith.addf %221, %222 : vector<2x32xf32>
    %224 = math.tanh %223 : vector<2x32xf32>
    %225 = arith.mulf %220, %224 : vector<2x32xf32>
    %226 = vector.shape_cast %225 : vector<2x32xf32> to vector<2x1x32xf32>
    %c0_53 = arith.constant 0 : index
    %c6 = arith.constant 6 : index
    %c0_54 = arith.constant 0 : index
    %227 = vector.load %arg11[%c0_53, %c6, %c0_54] : memref<2x8x32xf32, #tpu.memory_space<vmem>>, vector<2x1x32xf32>
    tpu.vector_store %arg11[%c0_53, %c6, %c0_54], %226 {strides = array<i32>} : memref<2x8x32xf32, #tpu.memory_space<vmem>>, vector<2x1x32xf32>,
    %228 = vector.extract_strided_slice %7 {offsets = [0, 7, 0], sizes = [2, 1, 128], strides = [1, 1, 1]} : vector<2x8x128xf32> to vector<2x1x128xf32>
    %229 = vector.shape_cast %228 : vector<2x1x128xf32> to vector<2x128xf32>
    %cst_55 = arith.constant dense<0.000000e+00> : vector<2x128xf32>
    %230 = tpu.matmul %225, %8, %cst_55 {dimension_numbers = #tpu.dot_dimension_numbers<[1], [0], [0], [1], [0, 0, 1, 1], [], []>} : vector<2x32xf32>, vector<32x128xf32>, vector<2x128xf32> -> vector<2x128xf32>
    %231 = arith.addf %229, %230 : vector<2x128xf32>
    %232 = vector.extract_strided_slice %231 {offsets = [0, 0], sizes = [2, 32], strides = [1, 1]} : vector<2x128xf32> to vector<2x32xf32>
    %233 = arith.negf %232 : vector<2x32xf32>
    %234 = math.exp %233 : vector<2x32xf32>
    %cst_56 = arith.constant 1.000000e+00 : f32
    %235 = vector.broadcast %cst_56 : f32 to vector<2x32xf32>
    %236 = arith.addf %235, %234 : vector<2x32xf32>
    %237 = arith.divf %235, %236 : vector<2x32xf32>
    %238 = vector.extract_strided_slice %231 {offsets = [0, 32], sizes = [2, 32], strides = [1, 1]} : vector<2x128xf32> to vector<2x32xf32>
    %239 = arith.negf %238 : vector<2x32xf32>
    %240 = math.exp %239 : vector<2x32xf32>
    %cst_57 = arith.constant 1.000000e+00 : f32
    %241 = vector.broadcast %cst_57 : f32 to vector<2x32xf32>
    %242 = arith.addf %241, %240 : vector<2x32xf32>
    %243 = arith.divf %241, %242 : vector<2x32xf32>
    %244 = vector.extract_strided_slice %231 {offsets = [0, 64], sizes = [2, 32], strides = [1, 1]} : vector<2x128xf32> to vector<2x32xf32>
    %245 = math.tanh %244 : vector<2x32xf32>
    %246 = vector.extract_strided_slice %231 {offsets = [0, 96], sizes = [2, 32], strides = [1, 1]} : vector<2x128xf32> to vector<2x32xf32>
    %247 = arith.negf %246 : vector<2x32xf32>
    %248 = math.exp %247 : vector<2x32xf32>
    %cst_58 = arith.constant 1.000000e+00 : f32
    %249 = vector.broadcast %cst_58 : f32 to vector<2x32xf32>
    %250 = arith.addf %249, %248 : vector<2x32xf32>
    %251 = arith.divf %249, %250 : vector<2x32xf32>
    %252 = arith.mulf %243, %223 : vector<2x32xf32>
    %253 = arith.mulf %237, %245 : vector<2x32xf32>
    %254 = arith.addf %252, %253 : vector<2x32xf32>
    %255 = math.tanh %254 : vector<2x32xf32>
    %256 = arith.mulf %251, %255 : vector<2x32xf32>
    %257 = vector.shape_cast %256 : vector<2x32xf32> to vector<2x1x32xf32>
    %c0_59 = arith.constant 0 : index
    %c7 = arith.constant 7 : index
    %c0_60 = arith.constant 0 : index
    %258 = vector.load %arg11[%c0_59, %c7, %c0_60] : memref<2x8x32xf32, #tpu.memory_space<vmem>>, vector<2x1x32xf32>
    tpu.vector_store %arg11[%c0_59, %c7, %c0_60], %257 {strides = array<i32>} : memref<2x8x32xf32, #tpu.memory_space<vmem>>, vector<2x1x32xf32>,
    %c0_61 = arith.constant 0 : index
    %c0_62 = arith.constant 0 : index
    %c0_63 = arith.constant 0 : index
    %259 = vector.load %arg11[%c0_61, %c0_62, %c0_63] : memref<2x8x32xf32, #tpu.memory_space<vmem>>, vector<2x8x32xf32>
    %260 = vector.shape_cast %259 : vector<2x8x32xf32> to vector<16x32xf32>
    %c0_64 = arith.constant 0 : index
    %c0_65 = arith.constant 0 : index
    %261 = vector.load %arg6[%c0_64, %c0_65] : memref<32x8xf32, #tpu.memory_space<vmem>>, vector<32x8xf32>
    %cst_66 = arith.constant dense<0.000000e+00> : vector<16x8xf32>
    %262 = tpu.matmul %260, %261, %cst_66 {dimension_numbers = #tpu.dot_dimension_numbers<[1], [0], [0], [1], [0, 0, 1, 1], [], []>} : vector<16x32xf32>, vector<32x8xf32>, vector<16x8xf32> -> vector<16x8xf32>
    %c0_67 = arith.constant 0 : index
    %c0_68 = arith.constant 0 : index
    %263 = vector.load %arg7[%c0_67, %c0_68] : memref<1x8xf32, #tpu.memory_space<vmem>>, vector<1x8xf32>
    %264 = vector.broadcast %263 : vector<1x8xf32> to vector<16x8xf32>
    %265 = arith.addf %262, %264 : vector<16x8xf32>
    %266 = vector.shape_cast %265 : vector<16x8xf32> to vector<2x8x8xf32>
    %c0_69 = arith.constant 0 : index
    %c0_70 = arith.constant 0 : index
    %c0_71 = arith.constant 0 : index
    %267 = vector.load %arg8[%c0_69, %c0_70, %c0_71] : memref<2x8x8xf32, #tpu.memory_space<vmem>>, vector<2x8x8xf32>
    tpu.vector_store %arg8[%c0_69, %c0_70, %c0_71], %266 {strides = array<i32>} : memref<2x8x8xf32, #tpu.memory_space<vmem>>, vector<2x8x8xf32>,
    %c0_72 = arith.constant 0 : index
    %c0_73 = arith.constant 0 : index
    %268 = vector.load %arg9[%c0_72, %c0_73] : memref<2x32xf32, #tpu.memory_space<vmem>>, vector<2x32xf32>
    tpu.vector_store %arg9[%c0_72, %c0_73], %256 {strides = array<i32>} : memref<2x32xf32, #tpu.memory_space<vmem>>, vector<2x32xf32>,
    %c0_74 = arith.constant 0 : index
    %c0_75 = arith.constant 0 : index
    %269 = vector.load %arg10[%c0_74, %c0_75] : memref<2x32xf32, #tpu.memory_space<vmem>>, vector<2x32xf32>
    tpu.vector_store %arg10[%c0_74, %c0_75], %254 {strides = array<i32>} : memref<2x32xf32, #tpu.memory_space<vmem>>, vector<2x32xf32>,
    return
  }
}

</mosaic_0001>

<llo_original>
// kernel: net_forward.1
$region0: #{net_forward.1}
  #allocation0 [shape = 'u32[]', space=smem, size = 0x4, offset = 0x4, fixed_abs, tag = 'smem constant byte address 0x4 - core index']
  #allocation1 [shape = 'u32[72,128]{1,0:T(1,128)}', space=vmem, size = 0x9000, scoped, tag = 'internal scratch']
  #allocation2 [shape = 'f32[2,8,32]{2,1,0:T(8,128)}', space=vmem, size = 0x2000, scoped, tag = 'scratch operand']
  %s0 = inlined_call_operand.hbm [shape: f32[2,8,16], index: 0, kind: input, shape index: {}]
  %s1 = inlined_call_operand.vmem [shape: f32[2,32], index: 1, kind: input, shape index: {}]
  %s2 = inlined_call_operand.vmem [shape: f32[2,32], index: 2, kind: input, shape index: {}]
  %s3 = inlined_call_operand.hbm [shape: f32[16,128], index: 3, kind: input, shape index: {}]
  %s4 = inlined_call_operand.vmem [shape: f32[32,128], index: 4, kind: input, shape index: {}]
  %s5 = inlined_call_operand.vmem [shape: f32[1,128], index: 5, kind: input, shape index: {}]
  %s6 = inlined_call_operand.vmem [shape: f32[32,8], index: 6, kind: input, shape index: {}]
  %s7 = inlined_call_operand.vmem [shape: f32[1,8], index: 7, kind: input, shape index: {}]
  %s8 = inlined_call_operand.hbm [shape: f32[2,8,8], index: 8, kind: output, shape index: {0}]
  %s9 = inlined_call_operand.hbm [shape: f32[2,32], index: 9, kind: output, shape index: {1}]
  %s10 = inlined_call_operand.hbm [shape: f32[2,32], index: 10, kind: output, shape index: {2}]
  %11 = xla_tuple %s8, %s9, %s10
  %s12 = sld [smem:[#allocation0]]
  $region66: #{net_forward.1} parent=0
    _
  %s14 = ssub.s32 1, %s12
  %s15 = scalar_select 0, %s14, %s12
  $region1: #{net_forward.1} parent=0
    #allocation3 [shape = 'u8[8192]{0}', space=vmem, size = 0x2000, scoped, tag = 'input window, operand 0, single buffered']
    #allocation4 [shape = 's32[1]{0}', space=sflag, size = 0x4, scoped, tag = 'scoped memory for net_forward.1']
    #allocation5 [shape = 's32[1]{0}', space=sflag, size = 0x4, scoped, tag = 'scoped memory for net_forward.1']
    #allocation6 [shape = 'u8[8192]{0}', space=vmem, size = 0x2000, scoped, tag = 'input window, operand 3, single buffered']
    #allocation7 [shape = 's32[1]{0}', space=sflag, size = 0x4, scoped, tag = 'scoped memory for net_forward.1']
    #allocation8 [shape = 'u8[8192]{0}', space=vmem, size = 0x2000, scoped, tag = 'output window, operand 0, single buffered']
    #allocation9 [shape = 'u8[1024]{0}', space=vmem, size = 0x400, scoped, tag = 'output window, operand 1, single buffered']
    #allocation10 [shape = 's32[1]{0}', space=sflag, size = 0x4, scoped, tag = 'scoped memory for net_forward.1']
    #allocation11 [shape = 'u8[1024]{0}', space=vmem, size = 0x400, scoped, tag = 'output window, operand 2, single buffered']
    %16 = vsyncpa [#allocation4], 0
    %17 = vsyncpa [#allocation7], 0
    %18 = vsyncpa [#allocation5], 0
    %19 = vsyncpa [#allocation10], 0
    // Predicated region
    $region2: #{net_forward.1} parent=1 // pred_check
      _
    $region3: #{net_forward.1} parent=1 // pred_check_branch
      %21 = sbr.rel (0) target = $region5
    $region4: #{net_forward.1} parent=1 // pred_region
      %23 = vsyncadd [#allocation4], 0
      %s24 = sshll.u32 %s0, 4
      %s25 = int_to_ptr.hbm [resolvable:$true] %s24
      %s26 = sshll.u32 [#allocation3], 4
      %s27 = int_to_ptr.vmem [resolvable:$true] %s26
      %32 = dma.hbm_to_vmem [thread:$0]  %s25, 256, %s27, [#allocation4], 128, 128, 8
    $region5: #{net_forward.1} parent=1 // pred_fallthru
      _
    // Predicated region
    $region6: #{net_forward.1} parent=1 // pred_check
      _
    $region7: #{net_forward.1} parent=1 // pred_check_branch
      %34 = sbr.rel (0) target = $region9
    $region8: #{net_forward.1} parent=1 // pred_region
      _
    $region9: #{net_forward.1} parent=1 // pred_fallthru
      _
    // Predicated region
    $region10: #{net_forward.1} parent=1 // pred_check
      _
    $region11: #{net_forward.1} parent=1 // pred_check_branch
      %36 = sbr.rel (0) target = $region13
    $region12: #{net_forward.1} parent=1 // pred_region
      _
    $region13: #{net_forward.1} parent=1 // pred_fallthru
      _
    // Predicated region
    $region14: #{net_forward.1} parent=1 // pred_check
      _
    $region15: #{net_forward.1} parent=1 // pred_check_branch
      %38 = sbr.rel (0) target = $region17
    $region16: #{net_forward.1} parent=1 // pred_region
      %40 = vsyncadd [#allocation7], 0
      %s41 = sshll.u32 %s3, 4
      %s42 = int_to_ptr.hbm [resolvable:$true] %s41
      %s43 = sshll.u32 [#allocation6], 4
      %s44 = int_to_ptr.vmem [resolvable:$true] %s43
      %49 = dma.hbm_to_vmem [thread:$0]  %s42, 256, %s44, [#allocation7], 128, 128, 8
    $region17: #{net_forward.1} parent=1 // pred_fallthru
      _
    // Predicated region
    $region18: #{net_forward.1} parent=1 // pred_check
      _
    $region19: #{net_forward.1} parent=1 // pred_check_branch
      %51 = sbr.rel (0) target = $region21
    $region20: #{net_forward.1} parent=1 // pred_region
      _
    $region21: #{net_forward.1} parent=1 // pred_fallthru
      _
    // Predicated region
    $region22: #{net_forward.1} parent=1 // pred_check
      _
    $region23: #{net_forward.1} parent=1 // pred_check_branch
      %53 = sbr.rel (0) target = $region25
    $region24: #{net_forward.1} parent=1 // pred_region
      _
    $region25: #{net_forward.1} parent=1 // pred_fallthru
      _
    // Predicated region
    $region26: #{net_forward.1} parent=1 // pred_check
      _
    $region27: #{net_forward.1} parent=1 // pred_check_branch
      %55 = sbr.rel (0) target = $region29
    $region28: #{net_forward.1} parent=1 // pred_region
      _
    $region29: #{net_forward.1} parent=1 // pred_fallthru
      _
    // Predicated region
    $region30: #{net_forward.1} parent=1 // pred_check
      _
    $region31: #{net_forward.1} parent=1 // pred_check_branch
      %57 = sbr.rel (0) target = $region33
    $region32: #{net_forward.1} parent=1 // pred_region
      _
    $region33: #{net_forward.1} parent=1 // pred_fallthru
      _
    // Predicated region
    $region34: #{net_forward.1} parent=1 // pred_check
      _
    $region35: #{net_forward.1} parent=1 // pred_check_branch
      %59 = sbr.rel (0) target = $region37
    $region36: #{net_forward.1} parent=1 // pred_region
      %61 = dma.done [#allocation4], 256
    $region37: #{net_forward.1} parent=1 // pred_fallthru
      _
    // Predicated region
    $region38: #{net_forward.1} parent=1 // pred_check
      _
    $region39: #{net_forward.1} parent=1 // pred_check_branch
      %63 = sbr.rel (0) target = $region41
    $region40: #{net_forward.1} parent=1 // pred_region
      %65 = dma.done [#allocation7], 256
    $region41: #{net_forward.1} parent=1 // pred_fallthru
      _
    %v66 = vld [vmem:[#allocation3] sm:$0xff]
    %v67 = vld [vmem:[#allocation3 + $0x8] sm:$0xff]
    %v68 = vld [vmem:[#allocation6] sm:$0xff]
    %v69 = vld [vmem:[#allocation6 + $0x8] sm:$0xff]
    %v70 = vld [vmem:[%s5] sm:$0x1]
    %v72 = vperm.slane %v70, 0
    %vm74 = vcmask 130048
    %v76 = vsel %vm74, %v66, 0
    %v79 = vsel %vm74, %v67, 0
    %81 = vmatpush.msra.mxu0 0.0
    %82 = vmatpush.msra.mxu0 0.0
    %83 = vmatpush.msra.mxu0 0.0
    %84 = vmatpush.msra.mxu0 0.0
    %85 = vmatpush.msra.mxu0 0.0
    %86 = vmatpush.msra.mxu0 0.0
    %87 = vmatpush.msra.mxu0 0.0
    %88 = vmatpush.msra.mxu0 0.0
    %89 = vmatpush.msra.mxu0 0.0
    %90 = vmatpush.msra.mxu0 0.0
    %91 = vmatpush.msra.mxu0 0.0
    %92 = vmatpush.msra.mxu0 0.0
    %93 = vmatpush.msra.mxu0 0.0
    %94 = vmatpush.msra.mxu0 0.0
    %95 = vmatpush.msra.mxu0 %v69
    %96 = vmatpush.msra.mxu0 %v68
    %97 = vmatmul.f32.gmra.mxu0 %v76
    %v98 = vpop.f32.mrf.mxu0
    %v99 = vadd.f32 %v72, %v98
    %100 = vmatmul.f32.gmra.mxu0 %v79
    %v101 = vpop.f32.mrf.mxu0
    %v102 = vadd.f32 %v72, %v101
    %103 = vdwg.mxu0
    %v104 = vld [vmem:[%s4] sm:$0xff]
    %v105 = vld [vmem:[%s4 + $0x8] sm:$0xff]
    %v106 = vld [vmem:[%s4 + $0x10] sm:$0xff]
    %v107 = vld [vmem:[%s4 + $0x18] sm:$0xff]
    %v108 = vld [vmem:[%s1] sm:$0x3]
    %v109 = vld [vmem:[%s2] sm:$0x3]
    %vm110 = vcmask 261120
    %v112 = vsel %vm110, %v108, 0
    %114 = vmatpush.msra.mxu0 0.0
    %115 = vmatpush.msra.mxu0 0.0
    %116 = vmatpush.msra.mxu0 0.0
    %117 = vmatpush.msra.mxu0 0.0
    %118 = vmatpush.msra.mxu0 0.0
    %119 = vmatpush.msra.mxu0 0.0
    %120 = vmatpush.msra.mxu0 0.0
    %121 = vmatpush.msra.mxu0 0.0
    %122 = vmatpush.msra.mxu0 0.0
    %123 = vmatpush.msra.mxu0 0.0
    %124 = vmatpush.msra.mxu0 0.0
    %125 = vmatpush.msra.mxu0 0.0
    %126 = vmatpush.msra.mxu0 %v107
    %127 = vmatpush.msra.mxu0 %v106
    %128 = vmatpush.msra.mxu0 %v105
    %129 = vmatpush.msra.mxu0 %v104
    %130 = vmatmul.f32.gmra.mxu0 %v112
    %v131 = vpop.f32.mrf.mxu0
    %v132 = vadd.f32 0.0, %v131
    %133 = vdwg.mxu0
    %v135 = vrot.slane %v132, 1
    %v138 = vadd.f32 %v99, %v132
    %v139 = vadd.f32 %v102, %v135
    %v140 = vxor.u32 %v138, 2147483648
    %v141 = vxor.u32 %v139, 2147483648
    %v142 = vmul.f32 %v140, 1.442695
    %v143 = vpow.pop %v142
    %v144 = vmul.f32 %v141, 1.442695
    %v145 = vpow.pop %v144
    %v146 = vadd.f32 %v143, 1.0
    %v147 = vadd.f32 %v145, 1.0
    %v148 = vrcp.pop %v146
    %v149 = vmul.f32 %v146, %v148
    %v150 = vsub.f32 1.0, %v149
    %v151 = vmul.f32 %v148, %v150
    %v152 = vadd.f32 %v148, %v151
    %vm153 = vweird.f32 %v146
    %vm154 = vweird.f32 %v148
    %vm155 = vmor %vm153, %vm154
    %v156 = vsel %vm155, %v148, %v152
    %v157 = vand.u32 2147483647, %v146
    %vm158 = vcmp.eq.f32.partialorder %v157, 8.507059e+37
    %v159 = vand.u32 %v146, 2147483648
    %v160 = vor.u32 1.1754944e-38, %v159
    %v161 = vsel %vm158, %v160, %v156
    %v162 = vmul.f32 1.0, %v161
    %v163 = vrcp.pop %v147
    %v164 = vmul.f32 %v147, %v163
    %v165 = vsub.f32 1.0, %v164
    %v166 = vmul.f32 %v163, %v165
    %v167 = vadd.f32 %v163, %v166
    %vm168 = vweird.f32 %v147
    %vm169 = vweird.f32 %v163
    %vm170 = vmor %vm168, %vm169
    %v171 = vsel %vm170, %v163, %v167
    %v172 = vand.u32 2147483647, %v147
    %vm173 = vcmp.eq.f32.partialorder %v172, 8.507059e+37
    %v174 = vand.u32 %v147, 2147483648
    %v175 = vor.u32 1.1754944e-38, %v174
    %v176 = vsel %vm173, %v175, %v171
    %v177 = vmul.f32 1.0, %v176
    %v178 = vtanh.pop %v138
    %v179 = vtanh.pop %v139
    %v181 = vrot.slane %v109, 1
    %182 = vrot.lane.b32.xlu0 %v109, 32
    %v183 = vpop.permute.xlu0 %182
    %184 = vrot.lane.b32.xlu0 %v181, 32
    %v185 = vpop.permute.xlu0 %184
    %v188 = vmul.f32 %v162, %v183
    %v189 = vmul.f32 %v177, %v185
    %192 = vrot.lane.b32.xlu0 %v178, 64
    %v193 = vpop.permute.xlu0 %192
    %194 = vrot.lane.b32.xlu0 %v179, 64
    %v195 = vpop.permute.xlu0 %194
    %v198 = vmul.f32 %v162, %v193
    %v199 = vmul.f32 %v177, %v195
    %202 = vrot.lane.b32.xlu0 %v198, 32
    %v203 = vpop.permute.xlu0 %202
    %204 = vrot.lane.b32.xlu0 %v199, 32
    %v205 = vpop.permute.xlu0 %204
    %v208 = vadd.f32 %v188, %v203
    %v209 = vadd.f32 %v189, %v205
    %v210 = vtanh.pop %v208
    %v211 = vtanh.pop %v209
    %214 = vrot.lane.b32.xlu0 %v210, 64
    %v215 = vpop.permute.xlu0 %214
    %216 = vrot.lane.b32.xlu0 %v211, 64
    %v217 = vpop.permute.xlu0 %216
    %v220 = vmul.f32 %v162, %v215
    %v221 = vmul.f32 %v177, %v217
    %224 = vrot.lane.b32.xlu0 %v220, 32
    %v225 = vpop.permute.xlu0 %224
    %226 = vrot.lane.b32.xlu0 %v221, 32
    %v227 = vpop.permute.xlu0 %226
    %vm230 = vcmask 253952
    %231 = vst.msk [vmem:[#allocation2] sm:$0x1] %vm230, %v225
    %232 = vst.msk [vmem:[#allocation2 + $0x8] sm:$0x1] %vm230, %v227
    %v233 = vrot.slane %v221, 7
    %vm234 = vcmask 1041409
    %v235 = vsel %vm234, %v233, %v220
    %236 = vrot.lane.b32.xlu0 %v235, 32
    %v237 = vpop.permute.xlu0 %236
    %v238 = vsel %vm110, %v237, 0
    %240 = vmatpush.msra.mxu0 0.0
    %241 = vmatpush.msra.mxu0 0.0
    %242 = vmatpush.msra.mxu0 0.0
    %243 = vmatpush.msra.mxu0 0.0
    %244 = vmatpush.msra.mxu0 0.0
    %245 = vmatpush.msra.mxu0 0.0
    %246 = vmatpush.msra.mxu0 0.0
    %247 = vmatpush.msra.mxu0 0.0
    %248 = vmatpush.msra.mxu0 0.0
    %249 = vmatpush.msra.mxu0 0.0
    %250 = vmatpush.msra.mxu0 0.0
    %251 = vmatpush.msra.mxu0 0.0
    %252 = vmatpush.msra.mxu0 %v107
    %253 = vmatpush.msra.mxu0 %v106
    %254 = vmatpush.msra.mxu0 %v105
    %255 = vmatpush.msra.mxu0 %v104
    %256 = vmatmul.f32.gmra.mxu0 %v238
    %v257 = vpop.f32.mrf.mxu0
    %v258 = vadd.f32 0.0, %v257
    %259 = vdwg.mxu0
    %v261 = vrot.slane %v258, 7
    %v264 = vadd.f32 %v99, %v261
    %v265 = vadd.f32 %v102, %v258
    %v266 = vxor.u32 %v264, 2147483648
    %v267 = vxor.u32 %v265, 2147483648
    %v268 = vmul.f32 %v266, 1.442695
    %v269 = vpow.pop %v268
    %v270 = vmul.f32 %v267, 1.442695
    %v271 = vpow.pop %v270
    %v272 = vadd.f32 %v269, 1.0
    %v273 = vadd.f32 %v271, 1.0
    %v274 = vrcp.pop %v272
    %v275 = vmul.f32 %v272, %v274
    %v276 = vsub.f32 1.0, %v275
    %v277 = vmul.f32 %v274, %v276
    %v278 = vadd.f32 %v274, %v277
    %vm279 = vweird.f32 %v272
    %vm280 = vweird.f32 %v274
    %vm281 = vmor %vm279, %vm280
    %v282 = vsel %vm281, %v274, %v278
    %v283 = vand.u32 2147483647, %v272
    %vm284 = vcmp.eq.f32.partialorder %v283, 8.507059e+37
    %v285 = vand.u32 %v272, 2147483648
    %v286 = vor.u32 1.1754944e-38, %v285
    %v287 = vsel %vm284, %v286, %v282
    %v288 = vmul.f32 1.0, %v287
    %v289 = vrcp.pop %v273
    %v290 = vmul.f32 %v273, %v289
    %v291 = vsub.f32 1.0, %v290
    %v292 = vmul.f32 %v289, %v291
    %v293 = vadd.f32 %v289, %v292
    %vm294 = vweird.f32 %v273
    %vm295 = vweird.f32 %v289
    %vm296 = vmor %vm294, %vm295
    %v297 = vsel %vm296, %v289, %v293
    %v298 = vand.u32 2147483647, %v273
    %vm299 = vcmp.eq.f32.partialorder %v298, 8.507059e+37
    %v300 = vand.u32 %v273, 2147483648
    %v301 = vor.u32 1.1754944e-38, %v300
    %v302 = vsel %vm299, %v301, %v297
    %v303 = vmul.f32 1.0, %v302
    %v304 = vtanh.pop %v264
    %v305 = vtanh.pop %v265
    %v308 = vrot.slane %v208, 7
    %v309 = vrot.slane %v209, 7
    %v312 = vmul.f32 %v288, %v308
    %v313 = vmul.f32 %v303, %v309
    %316 = vrot.lane.b32.xlu0 %v304, 64
    %v317 = vpop.permute.xlu0 %316
    %318 = vrot.lane.b32.xlu0 %v305, 64
    %v319 = vpop.permute.xlu0 %318
    %v322 = vmul.f32 %v288, %v317
    %v323 = vmul.f32 %v303, %v319
    %326 = vrot.lane.b32.xlu0 %v322, 32
    %v327 = vpop.permute.xlu0 %326
    %328 = vrot.lane.b32.xlu0 %v323, 32
    %v329 = vpop.permute.xlu0 %328
    %v332 = vadd.f32 %v312, %v327
    %v333 = vadd.f32 %v313, %v329
    %v334 = vtanh.pop %v332
    %v335 = vtanh.pop %v333
    %338 = vrot.lane.b32.xlu0 %v334, 64
    %v339 = vpop.permute.xlu0 %338
    %340 = vrot.lane.b32.xlu0 %v335, 64
    %v341 = vpop.permute.xlu0 %340
    %v344 = vmul.f32 %v288, %v339
    %v345 = vmul.f32 %v303, %v341
    %348 = vrot.lane.b32.xlu0 %v344, 32
    %v349 = vpop.permute.xlu0 %348
    %350 = vrot.lane.b32.xlu0 %v345, 32
    %v351 = vpop.permute.xlu0 %350
    %vm354 = vcmask 254977
    %355 = vst.msk [vmem:[#allocation2] sm:$0x2] %vm354, %v349
    %356 = vst.msk [vmem:[#allocation2 + $0x8] sm:$0x2] %vm354, %v351
    %v357 = vrot.slane %v344, 1
    %v358 = vsel %vm234, %v345, %v357
    %359 = vrot.lane.b32.xlu0 %v358, 32
    %v360 = vpop.permute.xlu0 %359
    %v361 = vsel %vm110, %v360, 0
    %363 = vmatpush.msra.mxu0 0.0
    %364 = vmatpush.msra.mxu0 0.0
    %365 = vmatpush.msra.mxu0 0.0
    %366 = vmatpush.msra.mxu0 0.0
    %367 = vmatpush.msra.mxu0 0.0
    %368 = vmatpush.msra.mxu0 0.0
    %369 = vmatpush.msra.mxu0 0.0
    %370 = vmatpush.msra.mxu0 0.0
    %371 = vmatpush.msra.mxu0 0.0
    %372 = vmatpush.msra.mxu0 0.0
    %373 = vmatpush.msra.mxu0 0.0
    %374 = vmatpush.msra.mxu0 0.0
    %375 = vmatpush.msra.mxu0 %v107
    %376 = vmatpush.msra.mxu0 %v106
    %377 = vmatpush.msra.mxu0 %v105
    %378 = vmatpush.msra.mxu0 %v104
    %379 = vmatmul.f32.gmra.mxu0 %v361
    %v380 = vpop.f32.mrf.mxu0
    %v381 = vadd.f32 0.0, %v380
    %382 = vdwg.mxu0
    %v384 = vrot.slane %v381, 6
    %v385 = vrot.slane %v381, 7
    %v388 = vadd.f32 %v99, %v384
    %v389 = vadd.f32 %v102, %v385
    %v390 = vxor.u32 %v388, 2147483648
    %v391 = vxor.u32 %v389, 2147483648
    %v392 = vmul.f32 %v390, 1.442695
    %v393 = vpow.pop %v392
    %v394 = vmul.f32 %v391, 1.442695
    %v395 = vpow.pop %v394
    %v396 = vadd.f32 %v393, 1.0
    %v397 = vadd.f32 %v395, 1.0
    %v398 = vrcp.pop %v396
    %v399 = vmul.f32 %v396, %v398
    %v400 = vsub.f32 1.0, %v399
    %v401 = vmul.f32 %v398, %v400
    %v402 = vadd.f32 %v398, %v401
    %vm403 = vweird.f32 %v396
    %vm404 = vweird.f32 %v398
    %vm405 = vmor %vm403, %vm404
    %v406 = vsel %vm405, %v398, %v402
    %v407 = vand.u32 2147483647, %v396
    %vm408 = vcmp.eq.f32.partialorder %v407, 8.507059e+37
    %v409 = vand.u32 %v396, 2147483648
    %v410 = vor.u32 1.1754944e-38, %v409
    %v411 = vsel %vm408, %v410, %v406
    %v412 = vmul.f32 1.0, %v411
    %v413 = vrcp.pop %v397
    %v414 = vmul.f32 %v397, %v413
    %v415 = vsub.f32 1.0, %v414
    %v416 = vmul.f32 %v413, %v415
    %v417 = vadd.f32 %v413, %v416
    %vm418 = vweird.f32 %v397
    %vm419 = vweird.f32 %v413
    %vm420 = vmor %vm418, %vm419
    %v421 = vsel %vm420, %v413, %v417
    %v422 = vand.u32 2147483647, %v397
    %vm423 = vcmp.eq.f32.partialorder %v422, 8.507059e+37
    %v424 = vand.u32 %v397, 2147483648
    %v425 = vor.u32 1.1754944e-38, %v424
    %v426 = vsel %vm423, %v425, %v421
    %v427 = vmul.f32 1.0, %v426
    %v428 = vtanh.pop %v388
    %v429 = vtanh.pop %v389
    %v432 = vrot.slane %v332, 7
    %v433 = vrot.slane %v333, 7
    %v436 = vmul.f32 %v412, %v432
    %v437 = vmul.f32 %v427, %v433
    %440 = vrot.lane.b32.xlu0 %v428, 64
    %v441 = vpop.permute.xlu0 %440
    %442 = vrot.lane.b32.xlu0 %v429, 64
    %v443 = vpop.permute.xlu0 %442
    %v446 = vmul.f32 %v412, %v441
    %v447 = vmul.f32 %v427, %v443
    %450 = vrot.lane.b32.xlu0 %v446, 32
    %v451 = vpop.permute.xlu0 %450
    %452 = vrot.lane.b32.xlu0 %v447, 32
    %v453 = vpop.permute.xlu0 %452
    %v456 = vadd.f32 %v436, %v451
    %v457 = vadd.f32 %v437, %v453
    %v458 = vtanh.pop %v456
    %v459 = vtanh.pop %v457
    %462 = vrot.lane.b32.xlu0 %v458, 64
    %v463 = vpop.permute.xlu0 %462
    %464 = vrot.lane.b32.xlu0 %v459, 64
    %v465 = vpop.permute.xlu0 %464
    %v468 = vmul.f32 %v412, %v463
    %v469 = vmul.f32 %v427, %v465
    %472 = vrot.lane.b32.xlu0 %v468, 32
    %v473 = vpop.permute.xlu0 %472
    %474 = vrot.lane.b32.xlu0 %v469, 32
    %v475 = vpop.permute.xlu0 %474
    %vm478 = vcmask 256002
    %479 = vst.msk [vmem:[#allocation2] sm:$0x4] %vm478, %v473
    %480 = vst.msk [vmem:[#allocation2 + $0x8] sm:$0x4] %vm478, %v475
    %v481 = vrot.slane %v468, 2
    %v482 = vrot.slane %v469, 1
    %v483 = vsel %vm234, %v482, %v481
    %484 = vrot.lane.b32.xlu0 %v483, 32
    %v485 = vpop.permute.xlu0 %484
    %v486 = vsel %vm110, %v485, 0
    %488 = vmatpush.msra.mxu0 0.0
    %489 = vmatpush.msra.mxu0 0.0
    %490 = vmatpush.msra.mxu0 0.0
    %491 = vmatpush.msra.mxu0 0.0
    %492 = vmatpush.msra.mxu0 0.0
    %493 = vmatpush.msra.mxu0 0.0
    %494 = vmatpush.msra.mxu0 0.0
    %495 = vmatpush.msra.mxu0 0.0
    %496 = vmatpush.msra.mxu0 0.0
    %497 = vmatpush.msra.mxu0 0.0
    %498 = vmatpush.msra.mxu0 0.0
    %499 = vmatpush.msra.mxu0 0.0
    %500 = vmatpush.msra.mxu0 %v107
    %501 = vmatpush.msra.mxu0 %v106
    %502 = vmatpush.msra.mxu0 %v105
    %503 = vmatpush.msra.mxu0 %v104
    %504 = vmatmul.f32.gmra.mxu0 %v486
    %v505 = vpop.f32.mrf.mxu0
    %v506 = vadd.f32 0.0, %v505
    %507 = vdwg.mxu0
    %v509 = vrot.slane %v506, 5
    %v510 = vrot.slane %v506, 6
    %v513 = vadd.f32 %v99, %v509
    %v514 = vadd.f32 %v102, %v510
    %v515 = vxor.u32 %v513, 2147483648
    %v516 = vxor.u32 %v514, 2147483648
    %v517 = vmul.f32 %v515, 1.442695
    %v518 = vpow.pop %v517
    %v519 = vmul.f32 %v516, 1.442695
    %v520 = vpow.pop %v519
    %v521 = vadd.f32 %v518, 1.0
    %v522 = vadd.f32 %v520, 1.0
    %v523 = vrcp.pop %v521
    %v524 = vmul.f32 %v521, %v523
    %v525 = vsub.f32 1.0, %v524
    %v526 = vmul.f32 %v523, %v525
    %v527 = vadd.f32 %v523, %v526
    %vm528 = vweird.f32 %v521
    %vm529 = vweird.f32 %v523
    %vm530 = vmor %vm528, %vm529
    %v531 = vsel %vm530, %v523, %v527
    %v532 = vand.u32 2147483647, %v521
    %vm533 = vcmp.eq.f32.partialorder %v532, 8.507059e+37
    %v534 = vand.u32 %v521, 2147483648
    %v535 = vor.u32 1.1754944e-38, %v534
    %v536 = vsel %vm533, %v535, %v531
    %v537 = vmul.f32 1.0, %v536
    %v538 = vrcp.pop %v522
    %v539 = vmul.f32 %v522, %v538
    %v540 = vsub.f32 1.0, %v539
    %v541 = vmul.f32 %v538, %v540
    %v542 = vadd.f32 %v538, %v541
    %vm543 = vweird.f32 %v522
    %vm544 = vweird.f32 %v538
    %vm545 = vmor %vm543, %vm544
    %v546 = vsel %vm545, %v538, %v542
    %v547 = vand.u32 2147483647, %v522
    %vm548 = vcmp.eq.f32.partialorder %v547, 8.507059e+37
    %v549 = vand.u32 %v522, 2147483648
    %v550 = vor.u32 1.1754944e-38, %v549
    %v551 = vsel %vm548, %v550, %v546
    %v552 = vmul.f32 1.0, %v551
    %v553 = vtanh.pop %v513
    %v554 = vtanh.pop %v514
    %v557 = vrot.slane %v456, 7
    %v558 = vrot.slane %v457, 7
    %v561 = vmul.f32 %v537, %v557
    %v562 = vmul.f32 %v552, %v558
    %565 = vrot.lane.b32.xlu0 %v553, 64
    %v566 = vpop.permute.xlu0 %565
    %567 = vrot.lane.b32.xlu0 %v554, 64
    %v568 = vpop.permute.xlu0 %567
    %v571 = vmul.f32 %v537, %v566
    %v572 = vmul.f32 %v552, %v568
    %575 = vrot.lane.b32.xlu0 %v571, 32
    %v576 = vpop.permute.xlu0 %575
    %577 = vrot.lane.b32.xlu0 %v572, 32
    %v578 = vpop.permute.xlu0 %577
    %v581 = vadd.f32 %v561, %v576
    %v582 = vadd.f32 %v562, %v578
    %v583 = vtanh.pop %v581
    %v584 = vtanh.pop %v582
    %587 = vrot.lane.b32.xlu0 %v583, 64
    %v588 = vpop.permute.xlu0 %587
    %589 = vrot.lane.b32.xlu0 %v584, 64
    %v590 = vpop.permute.xlu0 %589
    %v593 = vmul.f32 %v537, %v588
    %v594 = vmul.f32 %v552, %v590
    %597 = vrot.lane.b32.xlu0 %v593, 32
    %v598 = vpop.permute.xlu0 %597
    %599 = vrot.lane.b32.xlu0 %v594, 32
    %v600 = vpop.permute.xlu0 %599
    %vm603 = vcmask 257027
    %604 = vst.msk [vmem:[#allocation2] sm:$0x8] %vm603, %v598
    %605 = vst.msk [vmem:[#allocation2 + $0x8] sm:$0x8] %vm603, %v600
    %v606 = vrot.slane %v593, 3
    %v607 = vrot.slane %v594, 2
    %v608 = vsel %vm234, %v607, %v606
    %609 = vrot.lane.b32.xlu0 %v608, 32
    %v610 = vpop.permute.xlu0 %609
    %v611 = vsel %vm110, %v610, 0
    %613 = vmatpush.msra.mxu0 0.0
    %614 = vmatpush.msra.mxu0 0.0
    %615 = vmatpush.msra.mxu0 0.0
    %616 = vmatpush.msra.mxu0 0.0
    %617 = vmatpush.msra.mxu0 0.0
    %618 = vmatpush.msra.mxu0 0.0
    %619 = vmatpush.msra.mxu0 0.0
    %620 = vmatpush.msra.mxu0 0.0
    %621 = vmatpush.msra.mxu0 0.0
    %622 = vmatpush.msra.mxu0 0.0
    %623 = vmatpush.msra.mxu0 0.0
    %624 = vmatpush.msra.mxu0 0.0
    %625 = vmatpush.msra.mxu0 %v107
    %626 = vmatpush.msra.mxu0 %v106
    %627 = vmatpush.msra.mxu0 %v105
    %628 = vmatpush.msra.mxu0 %v104
    %629 = vmatmul.f32.gmra.mxu0 %v611
    %v630 = vpop.f32.mrf.mxu0
    %v631 = vadd.f32 0.0, %v630
    %632 = vdwg.mxu0
    %v634 = vrot.slane %v631, 4
    %v635 = vrot.slane %v631, 5
    %v638 = vadd.f32 %v99, %v634
    %v639 = vadd.f32 %v102, %v635
    %v640 = vxor.u32 %v638, 2147483648
    %v641 = vxor.u32 %v639, 2147483648
    %v642 = vmul.f32 %v640, 1.442695
    %v643 = vpow.pop %v642
    %v644 = vmul.f32 %v641, 1.442695
    %v645 = vpow.pop %v644
    %v646 = vadd.f32 %v643, 1.0
    %v647 = vadd.f32 %v645, 1.0
    %v648 = vrcp.pop %v646
    %v649 = vmul.f32 %v646, %v648
    %v650 = vsub.f32 1.0, %v649
    %v651 = vmul.f32 %v648, %v650
    %v652 = vadd.f32 %v648, %v651
    %vm653 = vweird.f32 %v646
    %vm654 = vweird.f32 %v648
    %vm655 = vmor %vm653, %vm654
    %v656 = vsel %vm655, %v648, %v652
    %v657 = vand.u32 2147483647, %v646
    %vm658 = vcmp.eq.f32.partialorder %v657, 8.507059e+37
    %v659 = vand.u32 %v646, 2147483648
    %v660 = vor.u32 1.1754944e-38, %v659
    %v661 = vsel %vm658, %v660, %v656
    %v662 = vmul.f32 1.0, %v661
    %v663 = vrcp.pop %v647
    %v664 = vmul.f32 %v647, %v663
    %v665 = vsub.f32 1.0, %v664
    %v666 = vmul.f32 %v663, %v665
    %v667 = vadd.f32 %v663, %v666
    %vm668 = vweird.f32 %v647
    %vm669 = vweird.f32 %v663
    %vm670 = vmor %vm668, %vm669
    %v671 = vsel %vm670, %v663, %v667
    %v672 = vand.u32 2147483647, %v647
    %vm673 = vcmp.eq.f32.partialorder %v672, 8.507059e+37
    %v674 = vand.u32 %v647, 2147483648
    %v675 = vor.u32 1.1754944e-38, %v674
    %v676 = vsel %vm673, %v675, %v671
    %v677 = vmul.f32 1.0, %v676
    %v678 = vtanh.pop %v638
    %v679 = vtanh.pop %v639
    %v682 = vrot.slane %v581, 7
    %v683 = vrot.slane %v582, 7
    %v686 = vmul.f32 %v662, %v682
    %v687 = vmul.f32 %v677, %v683
    %690 = vrot.lane.b32.xlu0 %v678, 64
    %v691 = vpop.permute.xlu0 %690
    %692 = vrot.lane.b32.xlu0 %v679, 64
    %v693 = vpop.permute.xlu0 %692
    %v696 = vmul.f32 %v662, %v691
    %v697 = vmul.f32 %v677, %v693
    %700 = vrot.lane.b32.xlu0 %v696, 32
    %v701 = vpop.permute.xlu0 %700
    %702 = vrot.lane.b32.xlu0 %v697, 32
    %v703 = vpop.permute.xlu0 %702
    %v706 = vadd.f32 %v686, %v701
    %v707 = vadd.f32 %v687, %v703
    %v708 = vtanh.pop %v706
    %v709 = vtanh.pop %v707
    %712 = vrot.lane.b32.xlu0 %v708, 64
    %v713 = vpop.permute.xlu0 %712
    %714 = vrot.lane.b32.xlu0 %v709, 64
    %v715 = vpop.permute.xlu0 %714
    %v718 = vmul.f32 %v662, %v713
    %v719 = vmul.f32 %v677, %v715
    %722 = vrot.lane.b32.xlu0 %v718, 32
    %v723 = vpop.permute.xlu0 %722
    %724 = vrot.lane.b32.xlu0 %v719, 32
    %v725 = vpop.permute.xlu0 %724
    %vm728 = vcmask 258052
    %729 = vst.msk [vmem:[#allocation2] sm:$0x10] %vm728, %v723
    %730 = vst.msk [vmem:[#allocation2 + $0x8] sm:$0x10] %vm728, %v725
    %v731 = vrot.slane %v718, 4
    %v732 = vrot.slane %v719, 3
    %v733 = vsel %vm234, %v732, %v731
    %734 = vrot.lane.b32.xlu0 %v733, 32
    %v735 = vpop.permute.xlu0 %734
    %v736 = vsel %vm110, %v735, 0
    %738 = vmatpush.msra.mxu0 0.0
    %739 = vmatpush.msra.mxu0 0.0
    %740 = vmatpush.msra.mxu0 0.0
    %741 = vmatpush.msra.mxu0 0.0
    %742 = vmatpush.msra.mxu0 0.0
    %743 = vmatpush.msra.mxu0 0.0
    %744 = vmatpush.msra.mxu0 0.0
    %745 = vmatpush.msra.mxu0 0.0
    %746 = vmatpush.msra.mxu0 0.0
    %747 = vmatpush.msra.mxu0 0.0
    %748 = vmatpush.msra.mxu0 0.0
    %749 = vmatpush.msra.mxu0 0.0
    %750 = vmatpush.msra.mxu0 %v107
    %751 = vmatpush.msra.mxu0 %v106
    %752 = vmatpush.msra.mxu0 %v105
    %753 = vmatpush.msra.mxu0 %v104
    %754 = vmatmul.f32.gmra.mxu0 %v736
    %v755 = vpop.f32.mrf.mxu0
    %v756 = vadd.f32 0.0, %v755
    %757 = vdwg.mxu0
    %v759 = vrot.slane %v756, 3
    %v760 = vrot.slane %v756, 4
    %v763 = vadd.f32 %v99, %v759
    %v764 = vadd.f32 %v102, %v760
    %v765 = vxor.u32 %v763, 2147483648
    %v766 = vxor.u32 %v764, 2147483648
    %v767 = vmul.f32 %v765, 1.442695
    %v768 = vpow.pop %v767
    %v769 = vmul.f32 %v766, 1.442695
    %v770 = vpow.pop %v769
    %v771 = vadd.f32 %v768, 1.0
    %v772 = vadd.f32 %v770, 1.0
    %v773 = vrcp.pop %v771
    %v774 = vmul.f32 %v771, %v773
    %v775 = vsub.f32 1.0, %v774
    %v776 = vmul.f32 %v773, %v775
    %v777 = vadd.f32 %v773, %v776
    %vm778 = vweird.f32 %v771
    %vm779 = vweird.f32 %v773
    %vm780 = vmor %vm778, %vm779
    %v781 = vsel %vm780, %v773, %v777
    %v782 = vand.u32 2147483647, %v771
    %vm783 = vcmp.eq.f32.partialorder %v782, 8.507059e+37
    %v784 = vand.u32 %v771, 2147483648
    %v785 = vor.u32 1.1754944e-38, %v784
    %v786 = vsel %vm783, %v785, %v781
    %v787 = vmul.f32 1.0, %v786
    %v788 = vrcp.pop %v772
    %v789 = vmul.f32 %v772, %v788
    %v790 = vsub.f32 1.0, %v789
    %v791 = vmul.f32 %v788, %v790
    %v792 = vadd.f32 %v788, %v791
    %vm793 = vweird.f32 %v772
    %vm794 = vweird.f32 %v788
    %vm795 = vmor %vm793, %vm794
    %v796 = vsel %vm795, %v788, %v792
    %v797 = vand.u32 2147483647, %v772
    %vm798 = vcmp.eq.f32.partialorder %v797, 8.507059e+37
    %v799 = vand.u32 %v772, 2147483648
    %v800 = vor.u32 1.1754944e-38, %v799
    %v801 = vsel %vm798, %v800, %v796
    %v802 = vmul.f32 1.0, %v801
    %v803 = vtanh.pop %v763
    %v804 = vtanh.pop %v764
    %v807 = vrot.slane %v706, 7
    %v808 = vrot.slane %v707, 7
    %v811 = vmul.f32 %v787, %v807
    %v812 = vmul.f32 %v802, %v808
    %815 = vrot.lane.b32.xlu0 %v803, 64
    %v816 = vpop.permute.xlu0 %815
    %817 = vrot.lane.b32.xlu0 %v804, 64
    %v818 = vpop.permute.xlu0 %817
    %v821 = vmul.f32 %v787, %v816
    %v822 = vmul.f32 %v802, %v818
    %825 = vrot.lane.b32.xlu0 %v821, 32
    %v826 = vpop.permute.xlu0 %825
    %827 = vrot.lane.b32.xlu0 %v822, 32
    %v828 = vpop.permute.xlu0 %827
    %v831 = vadd.f32 %v811, %v826
    %v832 = vadd.f32 %v812, %v828
    %v833 = vtanh.pop %v831
    %v834 = vtanh.pop %v832
    %837 = vrot.lane.b32.xlu0 %v833, 64
    %v838 = vpop.permute.xlu0 %837
    %839 = vrot.lane.b32.xlu0 %v834, 64
    %v840 = vpop.permute.xlu0 %839
    %v843 = vmul.f32 %v787, %v838
    %v844 = vmul.f32 %v802, %v840
    %847 = vrot.lane.b32.xlu0 %v843, 32
    %v848 = vpop.permute.xlu0 %847
    %849 = vrot.lane.b32.xlu0 %v844, 32
    %v850 = vpop.permute.xlu0 %849
    %vm853 = vcmask 259077
    %854 = vst.msk [vmem:[#allocation2] sm:$0x20] %vm853, %v848
    %855 = vst.msk [vmem:[#allocation2 + $0x8] sm:$0x20] %vm853, %v850
    %v856 = vrot.slane %v843, 5
    %v857 = vrot.slane %v844, 4
    %v858 = vsel %vm234, %v857, %v856
    %859 = vrot.lane.b32.xlu0 %v858, 32
    %v860 = vpop.permute.xlu0 %859
    %v861 = vsel %vm110, %v860, 0
    %863 = vmatpush.msra.mxu0 0.0
    %864 = vmatpush.msra.mxu0 0.0
    %865 = vmatpush.msra.mxu0 0.0
    %866 = vmatpush.msra.mxu0 0.0
    %867 = vmatpush.msra.mxu0 0.0
    %868 = vmatpush.msra.mxu0 0.0
    %869 = vmatpush.msra.mxu0 0.0
    %870 = vmatpush.msra.mxu0 0.0
    %871 = vmatpush.msra.mxu0 0.0
    %872 = vmatpush.msra.mxu0 0.0
    %873 = vmatpush.msra.mxu0 0.0
    %874 = vmatpush.msra.mxu0 0.0
    %875 = vmatpush.msra.mxu0 %v107
    %876 = vmatpush.msra.mxu0 %v106
    %877 = vmatpush.msra.mxu0 %v105
    %878 = vmatpush.msra.mxu0 %v104
    %879 = vmatmul.f32.gmra.mxu0 %v861
    %v880 = vpop.f32.mrf.mxu0
    %v881 = vadd.f32 0.0, %v880
    %882 = vdwg.mxu0
    %v884 = vrot.slane %v881, 2
    %v885 = vrot.slane %v881, 3
    %v888 = vadd.f32 %v99, %v884
    %v889 = vadd.f32 %v102, %v885
    %v890 = vxor.u32 %v888, 2147483648
    %v891 = vxor.u32 %v889, 2147483648
    %v892 = vmul.f32 %v890, 1.442695
    %v893 = vpow.pop %v892
    %v894 = vmul.f32 %v891, 1.442695
    %v895 = vpow.pop %v894
    %v896 = vadd.f32 %v893, 1.0
    %v897 = vadd.f32 %v895, 1.0
    %v898 = vrcp.pop %v896
    %v899 = vmul.f32 %v896, %v898
    %v900 = vsub.f32 1.0, %v899
    %v901 = vmul.f32 %v898, %v900
    %v902 = vadd.f32 %v898, %v901
    %vm903 = vweird.f32 %v896
    %vm904 = vweird.f32 %v898
    %vm905 = vmor %vm903, %vm904
    %v906 = vsel %vm905, %v898, %v902
    %v907 = vand.u32 2147483647, %v896
    %vm908 = vcmp.eq.f32.partialorder %v907, 8.507059e+37
    %v909 = vand.u32 %v896, 2147483648
    %v910 = vor.u32 1.1754944e-38, %v909
    %v911 = vsel %vm908, %v910, %v906
    %v912 = vmul.f32 1.0, %v911
    %v913 = vrcp.pop %v897
    %v914 = vmul.f32 %v897, %v913
    %v915 = vsub.f32 1.0, %v914
    %v916 = vmul.f32 %v913, %v915
    %v917 = vadd.f32 %v913, %v916
    %vm918 = vweird.f32 %v897
    %vm919 = vweird.f32 %v913
    %vm920 = vmor %vm918, %vm919
    %v921 = vsel %vm920, %v913, %v917
    %v922 = vand.u32 2147483647, %v897
    %vm923 = vcmp.eq.f32.partialorder %v922, 8.507059e+37
    %v924 = vand.u32 %v897, 2147483648
    %v925 = vor.u32 1.1754944e-38, %v924
    %v926 = vsel %vm923, %v925, %v921
    %v927 = vmul.f32 1.0, %v926
    %v928 = vtanh.pop %v888
    %v929 = vtanh.pop %v889
    %v932 = vrot.slane %v831, 7
    %v933 = vrot.slane %v832, 7
    %v936 = vmul.f32 %v912, %v932
    %v937 = vmul.f32 %v927, %v933
    %940 = vrot.lane.b32.xlu0 %v928, 64
    %v941 = vpop.permute.xlu0 %940
    %942 = vrot.lane.b32.xlu0 %v929, 64
    %v943 = vpop.permute.xlu0 %942
    %v946 = vmul.f32 %v912, %v941
    %v947 = vmul.f32 %v927, %v943
    %950 = vrot.lane.b32.xlu0 %v946, 32
    %v951 = vpop.permute.xlu0 %950
    %952 = vrot.lane.b32.xlu0 %v947, 32
    %v953 = vpop.permute.xlu0 %952
    %v956 = vadd.f32 %v936, %v951
    %v957 = vadd.f32 %v937, %v953
    %v958 = vtanh.pop %v956
    %v959 = vtanh.pop %v957
    %962 = vrot.lane.b32.xlu0 %v958, 64
    %v963 = vpop.permute.xlu0 %962
    %964 = vrot.lane.b32.xlu0 %v959, 64
    %v965 = vpop.permute.xlu0 %964
    %v968 = vmul.f32 %v912, %v963
    %v969 = vmul.f32 %v927, %v965
    %972 = vrot.lane.b32.xlu0 %v968, 32
    %v973 = vpop.permute.xlu0 %972
    %974 = vrot.lane.b32.xlu0 %v969, 32
    %v975 = vpop.permute.xlu0 %974
    %vm978 = vcmask 260102
    %979 = vst.msk [vmem:[#allocation2] sm:$0x40] %vm978, %v973
    %980 = vst.msk [vmem:[#allocation2 + $0x8] sm:$0x40] %vm978, %v975
    %v981 = vrot.slane %v968, 6
    %v982 = vrot.slane %v969, 5
    %v983 = vsel %vm234, %v982, %v981
    %984 = vrot.lane.b32.xlu0 %v983, 32
    %v985 = vpop.permute.xlu0 %984
    %v986 = vsel %vm110, %v985, 0
    %988 = vmatpush.msra.mxu0 0.0
    %989 = vmatpush.msra.mxu0 0.0
    %990 = vmatpush.msra.mxu0 0.0
    %991 = vmatpush.msra.mxu0 0.0
    %992 = vmatpush.msra.mxu0 0.0
    %993 = vmatpush.msra.mxu0 0.0
    %994 = vmatpush.msra.mxu0 0.0
    %995 = vmatpush.msra.mxu0 0.0
    %996 = vmatpush.msra.mxu0 0.0
    %997 = vmatpush.msra.mxu0 0.0
    %998 = vmatpush.msra.mxu0 0.0
    %999 = vmatpush.msra.mxu0 0.0
    %1000 = vmatpush.msra.mxu0 %v107
    %1001 = vmatpush.msra.mxu0 %v106
    %1002 = vmatpush.msra.mxu0 %v105
    %1003 = vmatpush.msra.mxu0 %v104
    %1004 = vmatmul.f32.gmra.mxu0 %v986
    %v1005 = vpop.f32.mrf.mxu0
    %v1006 = vadd.f32 0.0, %v1005
    %1007 = vdwg.mxu0
    %v1009 = vrot.slane %v1006, 1
    %v1010 = vrot.slane %v1006, 2
    %v1013 = vadd.f32 %v99, %v1009
    %v1014 = vadd.f32 %v102, %v1010
    %v1015 = vxor.u32 %v1013, 2147483648
    %v1016 = vxor.u32 %v1014, 2147483648
    %v1017 = vmul.f32 %v1015, 1.442695
    %v1018 = vpow.pop %v1017
    %v1019 = vmul.f32 %v1016, 1.442695
    %v1020 = vpow.pop %v1019
    %v1021 = vadd.f32 %v1018, 1.0
    %v1022 = vadd.f32 %v1020, 1.0
    %v1023 = vrcp.pop %v1021
    %v1024 = vmul.f32 %v1021, %v1023
    %v1025 = vsub.f32 1.0, %v1024
    %v1026 = vmul.f32 %v1023, %v1025
    %v1027 = vadd.f32 %v1023, %v1026
    %vm1028 = vweird.f32 %v1021
    %vm1029 = vweird.f32 %v1023
    %vm1030 = vmor %vm1028, %vm1029
    %v1031 = vsel %vm1030, %v1023, %v1027
    %v1032 = vand.u32 2147483647, %v1021
    %vm1033 = vcmp.eq.f32.partialorder %v1032, 8.507059e+37
    %v1034 = vand.u32 %v1021, 2147483648
    %v1035 = vor.u32 1.1754944e-38, %v1034
    %v1036 = vsel %vm1033, %v1035, %v1031
    %v1037 = vmul.f32 1.0, %v1036
    %v1038 = vrcp.pop %v1022
    %v1039 = vmul.f32 %v1022, %v1038
    %v1040 = vsub.f32 1.0, %v1039
    %v1041 = vmul.f32 %v1038, %v1040
    %v1042 = vadd.f32 %v1038, %v1041
    %vm1043 = vweird.f32 %v1022
    %vm1044 = vweird.f32 %v1038
    %vm1045 = vmor %vm1043, %vm1044
    %v1046 = vsel %vm1045, %v1038, %v1042
    %v1047 = vand.u32 2147483647, %v1022
    %vm1048 = vcmp.eq.f32.partialorder %v1047, 8.507059e+37
    %v1049 = vand.u32 %v1022, 2147483648
    %v1050 = vor.u32 1.1754944e-38, %v1049
    %v1051 = vsel %vm1048, %v1050, %v1046
    %v1052 = vmul.f32 1.0, %v1051
    %v1053 = vtanh.pop %v1013
    %v1054 = vtanh.pop %v1014
    %v1057 = vrot.slane %v956, 7
    %v1058 = vrot.slane %v957, 7
    %v1061 = vmul.f32 %v1037, %v1057
    %v1062 = vmul.f32 %v1052, %v1058
    %1065 = vrot.lane.b32.xlu0 %v1053, 64
    %v1066 = vpop.permute.xlu0 %1065
    %1067 = vrot.lane.b32.xlu0 %v1054, 64
    %v1068 = vpop.permute.xlu0 %1067
    %v1071 = vmul.f32 %v1037, %v1066
    %v1072 = vmul.f32 %v1052, %v1068
    %1075 = vrot.lane.b32.xlu0 %v1071, 32
    %v1076 = vpop.permute.xlu0 %1075
    %1077 = vrot.lane.b32.xlu0 %v1072, 32
    %v1078 = vpop.permute.xlu0 %1077
    %v1081 = vadd.f32 %v1061, %v1076
    %v1082 = vadd.f32 %v1062, %v1078
    %v1083 = vtanh.pop %v1081
    %v1084 = vtanh.pop %v1082
    %1087 = vrot.lane.b32.xlu0 %v1083, 64
    %v1088 = vpop.permute.xlu0 %1087
    %1089 = vrot.lane.b32.xlu0 %v1084, 64
    %v1090 = vpop.permute.xlu0 %1089
    %v1093 = vmul.f32 %v1037, %v1088
    %v1094 = vmul.f32 %v1052, %v1090
    %1097 = vrot.lane.b32.xlu0 %v1093, 32
    %v1098 = vpop.permute.xlu0 %1097
    %1099 = vrot.lane.b32.xlu0 %v1094, 32
    %v1100 = vpop.permute.xlu0 %1099
    %vm1103 = vcmask 261127
    %1104 = vst.msk [vmem:[#allocation2] sm:$0x80] %vm1103, %v1098
    %1105 = vst.msk [vmem:[#allocation2 + $0x8] sm:$0x80] %vm1103, %v1100
    %v1106 = vld [vmem:[#allocation2] sm:$0xff]
    %v1107 = vld [vmem:[#allocation2 + $0x8] sm:$0xff]
    %v1108 = vld [vmem:[%s6] sm:$0xff]
    %v1109 = vld [vmem:[%s6 + $0x8] sm:$0xff]
    %v1110 = vld [vmem:[%s6 + $0x10] sm:$0xff]
    %v1111 = vld [vmem:[%s6 + $0x18] sm:$0xff]
    %v1112 = vld [vmem:[%s7] sm:$0x1]
    %v1114 = vperm.slane %v1112, 0
    %v1117 = vsel %vm110, %v1106, 0
    %v1120 = vsel %vm110, %v1107, 0
    %1122 = vmatpush.msra.mxu0 0.0
    %1123 = vmatpush.msra.mxu0 0.0
    %1124 = vmatpush.msra.mxu0 0.0
    %1125 = vmatpush.msra.mxu0 0.0
    %1126 = vmatpush.msra.mxu0 0.0
    %1127 = vmatpush.msra.mxu0 0.0
    %1128 = vmatpush.msra.mxu0 0.0
    %1129 = vmatpush.msra.mxu0 0.0
    %1130 = vmatpush.msra.mxu0 0.0
    %1131 = vmatpush.msra.mxu0 0.0
    %1132 = vmatpush.msra.mxu0 0.0
    %1133 = vmatpush.msra.mxu0 0.0
    %1134 = vmatpush.msra.mxu0 %v1111
    %1135 = vmatpush.msra.mxu0 %v1110
    %1136 = vmatpush.msra.mxu0 %v1109
    %1137 = vmatpush.msra.mxu0 %v1108
    %1138 = vmatmul.f32.gmra.mxu0 %v1117
    %v1139 = vpop.f32.mrf.mxu0
    %v1140 = vadd.f32 %v1114, %v1139
    %1141 = vmatmul.f32.gmra.mxu0 %v1120
    %v1142 = vpop.f32.mrf.mxu0
    %v1143 = vadd.f32 %v1114, %v1142
    %1144 = vdwg.mxu0
    %vm1145 = vcmask 64512
    %1146 = vst.msk [vmem:[#allocation8] sm:$0xff] %vm1145, %v1140
    %1147 = vst.msk [vmem:[#allocation8 + $0x8] sm:$0xff] %vm1145, %v1143
    %v1148 = vrot.slane %v1094, 7
    %1149 = vrot.lane.b32.xlu0 %v1148, 32
    %v1150 = vpop.permute.xlu0 %1149
    %1152 = vst.msk [vmem:[#allocation9 - $0x7] sm:$0x80] %vm1103, %v1098
    %1153 = vst.msk [vmem:[#allocation9 + $0x1] sm:$0x1] %vm230, %v1150
    %v1156 = vrot.slane %v1082, 7
    %1157 = vrot.lane.b32.xlu0 %v1081, 96
    %v1158 = vpop.permute.xlu0 %1157
    %1159 = vrot.lane.b32.xlu0 %v1156, 96
    %v1160 = vpop.permute.xlu0 %1159
    %1163 = vst.msk [vmem:[#allocation11 - $0x7] sm:$0x80] %vm1103, %v1158
    %1164 = vst.msk [vmem:[#allocation11 + $0x1] sm:$0x1] %vm230, %v1160
    // Predicated region
    $region42: #{net_forward.1} parent=1 // pred_check
      _
    $region43: #{net_forward.1} parent=1 // pred_check_branch
      %1166 = sbr.rel (0) target = $region45
    $region44: #{net_forward.1} parent=1 // pred_region
      %1168 = vsyncadd [#allocation5], 0
      %s1169 = sshll.u32 [#allocation8], 4
      %s1170 = int_to_ptr.vmem [resolvable:$true] %s1169
      %s1171 = sshll.u32 %s8, 4
      %s1172 = int_to_ptr.hbm [resolvable:$true] %s1171
      %1177 = dma.vmem_to_hbm [thread:$0]  %s1170, 256, %s1172, [#allocation5], 128, 128, 8
    $region45: #{net_forward.1} parent=1 // pred_fallthru
      _
    // Predicated region
    $region46: #{net_forward.1} parent=1 // pred_check
      _
    $region47: #{net_forward.1} parent=1 // pred_check_branch
      %1179 = sbr.rel (0) target = $region49
    $region48: #{net_forward.1} parent=1 // pred_region
      %1181 = vsyncadd [#allocation10], 0
      %s1183 = sshll.u32 [#allocation9], 4
      %s1184 = int_to_ptr.vmem [resolvable:$true] %s1183
      %s1185 = sshll.u32 %s9, 4
      %s1186 = int_to_ptr.hbm [resolvable:$true] %s1185
      %1188 = dma.vmem_to_hbm [thread:$0]  %s1184, 32, %s1186, [#allocation10]
    $region49: #{net_forward.1} parent=1 // pred_fallthru
      _
    // Predicated region
    $region50: #{net_forward.1} parent=1 // pred_check
      _
    $region51: #{net_forward.1} parent=1 // pred_check_branch
      %1190 = sbr.rel (0) target = $region53
    $region52: #{net_forward.1} parent=1 // pred_region
      %1192 = vsyncadd [#allocation10], 0
      %s1194 = sshll.u32 [#allocation11], 4
      %s1195 = int_to_ptr.vmem [resolvable:$true] %s1194
      %s1196 = sshll.u32 %s10, 4
      %s1197 = int_to_ptr.hbm [resolvable:$true] %s1196
      %1199 = dma.vmem_to_hbm [thread:$0]  %s1195, 32, %s1197, [#allocation10]
    $region53: #{net_forward.1} parent=1 // pred_fallthru
      _
    // Predicated region
    $region54: #{net_forward.1} parent=1 // pred_check
      _
    $region55: #{net_forward.1} parent=1 // pred_check_branch
      %1201 = sbr.rel (0) target = $region57
    $region56: #{net_forward.1} parent=1 // pred_region
      %1203 = dma.done [#allocation5], 256
    $region57: #{net_forward.1} parent=1 // pred_fallthru
      _
    // Predicated region
    $region58: #{net_forward.1} parent=1 // pred_check
      _
    $region59: #{net_forward.1} parent=1 // pred_check_branch
      %1205 = sbr.rel (0) target = $region61
    $region60: #{net_forward.1} parent=1 // pred_region
      %1207 = dma.done [#allocation10], 32
    $region61: #{net_forward.1} parent=1 // pred_fallthru
      _
    // Predicated region
    $region62: #{net_forward.1} parent=1 // pred_check
      _
    $region63: #{net_forward.1} parent=1 // pred_check_branch
      %1209 = sbr.rel (0) target = $region65
    $region64: #{net_forward.1} parent=1 // pred_region
      %1211 = dma.done [#allocation10], 32
    $region65: #{net_forward.1} parent=1 // pred_fallthru
      _
    %1212 = vsyncpa [#allocation4], 1
    %1213 = vsyncpa [#allocation7], 1
    %1214 = vsyncpa [#allocation5], 1
    %1215 = vsyncpa [#allocation10], 1

</llo_original>
